<compile_context>
chip_gen: v7x
topology: tpu7x:2x2x1
jax: 0.10.0
libtpu: 0.0.40
codegen_flags: <defaults>
</compile_context>

<pallas_src>
import jax
import jax.numpy as jnp
import numpy as np
from jax.experimental import pallas as pl
from jax.experimental.pallas import tpu as pltpu


def _projection_head_kernel(x_ref, w1_ref, b1_ref, w2_ref, o_ref):
    # x_ref: (N, C, S) bf16 in VMEM, S = D*H*W (spatial extent == avg_pool kernel).
    n, c, s = x_ref.shape
    chunk = 128                      # one lane-tile per step: ~8 bf16 vregs live
    n_full = s // chunk              # static
    rem = s - n_full * chunk         # static

    # --- Global average pool over S, chunked so live vregs stay bounded. ---
    # Accumulate bf16 chunks into a (N, C, 128) f32 accumulator (VPU adds only),
    # then do a single cross-lane (XLU) reduce at the end.
    def body(i, acc):
        start = pl.multiple_of(i * chunk, chunk)
        blk = x_ref[:, :, pl.ds(start, chunk)].astype(jnp.float32)
        return acc + blk

    acc = jax.lax.fori_loop(
        0, n_full, body, jnp.zeros((n, c, chunk), jnp.float32), unroll=True)
    sums = jnp.sum(acc, axis=-1)                               # (N, C) f32
    if rem:  # static tail (S not a multiple of 128); masked load + reduce
        tail = x_ref[:, :, pl.ds(n_full * chunk, rem)].astype(jnp.float32)
        sums = sums + jnp.sum(tail, axis=-1)
    pooled = sums * (1.0 / s)        # scale the tiny (N, C) result, not x

    # --- Linear(input_dim -> hidden_dim), bias=True (MXU, f32 accumulate). ---
    h = jnp.dot(pooled, w1_ref[...],
                preferred_element_type=jnp.float32) + b1_ref[...]   # (N, H)

    # --- InstanceNorm1d on a 2D (N, H) tensor: PyTorch's unbatched (C=N, L=H)
    # path -> per-row normalization over H, biased variance, eps=1e-5, affine=False.
    mu = jnp.mean(h, axis=-1, keepdims=True)
    var = jnp.mean(jnp.square(h - mu), axis=-1, keepdims=True)
    h = (h - mu) * jax.lax.rsqrt(var + 1e-5)

    # --- ReLU (VPU). ---
    h = jnp.maximum(h, 0.0)

    # --- Linear(hidden_dim -> output_dim), bias=False (MXU). ---
    # Note: (N, output_dim)=(2, 64) output -> masked partial store; negligible here.
    o_ref[...] = jnp.dot(h, w2_ref[...], preferred_element_type=jnp.float32)


def projection_head_forward(x, w1, b1, w2, avg_pool_size):
    """x: (N, C, D, H, W) float32 (NCDHW, like PyTorch).
    w1: (input_dim, hidden_dim), b1: (hidden_dim,), w2: (hidden_dim, output_dim).
    """
    n, c, d, h, w = x.shape
    kd, kh, kw = avg_pool_size
    # The module's Linear(input_dim) only matches when the pooled+flattened size
    # equals input_dim, i.e. spatial dims == avg_pool kernel (global spatial mean).
    assert (d, h, w) == (kd, kh, kw), "spatial dims must equal avg_pool_size"
    # TODO(synk): general AvgPool3d (stride / multiple windows / count_include_pad)
    # is not needed for the module's default configuration and is not implemented.
    s = d * h * w

    # x is ~98% of all bytes moved: ship it as bf16 (half the HBM traffic); the
    # pooling sum is accumulated in f32 in-kernel. (In a real pipeline the
    # producer should already emit bf16; this cast fuses with the reshape.)
    x_flat = x.reshape(n, c, s).astype(jnp.bfloat16)

    hidden_dim = w1.shape[1]
    output_dim = w2.shape[1]
    b1_2d = b1.reshape(1, hidden_dim)

    # Everything is small (<1 MB total): whole arrays resident in VMEM, no grid.
    # If N*C*S ever grows past a few MiB, switch to a batch grid marked
    # "parallel" (2x on v7x dual-TC) and/or raise vmem_limit_bytes.
    return pl.pallas_call(
        _projection_head_kernel,
        out_shape=jax.ShapeDtypeStruct((n, output_dim), jnp.float32),
        in_specs=[
            pl.BlockSpec(memory_space=pltpu.MemorySpace.VMEM),  # x (N, C, S) bf16
            pl.BlockSpec(memory_space=pltpu.MemorySpace.VMEM),  # w1 (Cin, H) f32
            pl.BlockSpec(memory_space=pltpu.MemorySpace.VMEM),  # b1 (1, H) f32
            pl.BlockSpec(memory_space=pltpu.MemorySpace.VMEM),  # w2 (H, O) f32
        ],
        out_specs=pl.BlockSpec(memory_space=pltpu.MemorySpace.VMEM),
    )(x_flat, w1, b1_2d, w2)


def _reference(x, w1, b1, w2):
    n, c = x.shape[:2]
    pooled = x.reshape(n, c, -1).mean(axis=-1)
    y = pooled @ w1 + b1
    mu = y.mean(axis=-1, keepdims=True)
    var = ((y - mu) ** 2).mean(axis=-1, keepdims=True)
    y = (y - mu) / jnp.sqrt(var + 1e-5)
    y = jnp.maximum(y, 0.0)
    return y @ w2


if __name__ == "__main__":
    input_dim = hidden_dim = output_dim = 64
    avg_pool_size = (15, 15, 10)
    batch = 2

    key = jax.random.PRNGKey(0)
    kx, kw1, kb1, kw2 = jax.random.split(key, 4)

    # x: NCDHW with spatial == avg_pool_size -> flattened pooled dim == input_dim.
    x = jax.random.normal(kx, (batch, input_dim, *avg_pool_size), jnp.float32)

    # Deterministic parameter init (uniform with torch-Linear-like fan_in bound).
    bound1 = 1.0 / np.sqrt(input_dim)
    w1 = jax.random.uniform(kw1, (input_dim, hidden_dim), jnp.float32, -bound1, bound1)
    b1 = jax.random.uniform(kb1, (hidden_dim,), jnp.float32, -bound1, bound1)
    bound2 = 1.0 / np.sqrt(hidden_dim)
    w2 = jax.random.uniform(kw2, (hidden_dim, output_dim), jnp.float32, -bound2, bound2)

    out = projection_head_forward(x, w1, b1, w2, avg_pool_size)
    out = jax.block_until_ready(out)

    # Reference uses the same bf16-quantized input the kernel sees, so the check
    # isolates kernel numerics from the (intentional) bf16 input cast.
    x_q = x.astype(jnp.bfloat16).astype(jnp.float32)
    ref = _reference(x_q, w1, b1, w2)
    np.testing.assert_allclose(np.asarray(out), np.asarray(ref), rtol=5e-5, atol=5e-5)
    print("KERNEL_OK")
</pallas_src>

<mosaic_0001>
module attributes {stable_mosaic.version = 11 : i64} {
  func.func @_projection_head_kernel(%arg0: memref<2x64x2250xbf16, #tpu.memory_space<vmem>>, %arg1: memref<64x64xf32, #tpu.memory_space<vmem>>, %arg2: memref<1x64xf32, #tpu.memory_space<vmem>>, %arg3: memref<64x64xf32, #tpu.memory_space<vmem>>, %arg4: memref<2x64xf32, #tpu.memory_space<vmem>>) attributes {dimension_semantics = [], scalar_prefetch = 0 : i64, scratch_operands = 0 : i64, tpu.core_type = #tpu.core_type<tc>} {
    %cst = arith.constant 0.000000e+00 : f32
    %0 = vector.broadcast %cst : f32 to vector<2x64x128xf32>
    %c0_i32 = arith.constant 0 : i32
    %c128_i32 = arith.constant 128 : i32
    %1 = arith.muli %c0_i32, %c128_i32 : i32
    %2 = tpu.assume_multiple %1, 128 : i32
    %c0 = arith.constant 0 : index
    %c0_0 = arith.constant 0 : index
    %3 = arith.index_cast %2 : i32 to index
    %4 = vector.load %arg0[%c0, %c0_0, %3] : memref<2x64x2250xbf16, #tpu.memory_space<vmem>>, vector<2x64x128xbf16>
    %5 = arith.extf %4 : vector<2x64x128xbf16> to vector<2x64x128xf32>
    %6 = arith.addf %0, %5 : vector<2x64x128xf32>
    %c1_i32 = arith.constant 1 : i32
    %c128_i32_1 = arith.constant 128 : i32
    %7 = arith.muli %c1_i32, %c128_i32_1 : i32
    %8 = tpu.assume_multiple %7, 128 : i32
    %c0_2 = arith.constant 0 : index
    %c0_3 = arith.constant 0 : index
    %9 = arith.index_cast %8 : i32 to index
    %10 = vector.load %arg0[%c0_2, %c0_3, %9] : memref<2x64x2250xbf16, #tpu.memory_space<vmem>>, vector<2x64x128xbf16>
    %11 = arith.extf %10 : vector<2x64x128xbf16> to vector<2x64x128xf32>
    %12 = arith.addf %6, %11 : vector<2x64x128xf32>
    %c2_i32 = arith.constant 2 : i32
    %c128_i32_4 = arith.constant 128 : i32
    %13 = arith.muli %c2_i32, %c128_i32_4 : i32
    %14 = tpu.assume_multiple %13, 128 : i32
    %c0_5 = arith.constant 0 : index
    %c0_6 = arith.constant 0 : index
    %15 = arith.index_cast %14 : i32 to index
    %16 = vector.load %arg0[%c0_5, %c0_6, %15] : memref<2x64x2250xbf16, #tpu.memory_space<vmem>>, vector<2x64x128xbf16>
    %17 = arith.extf %16 : vector<2x64x128xbf16> to vector<2x64x128xf32>
    %18 = arith.addf %12, %17 : vector<2x64x128xf32>
    %c3_i32 = arith.constant 3 : i32
    %c128_i32_7 = arith.constant 128 : i32
    %19 = arith.muli %c3_i32, %c128_i32_7 : i32
    %20 = tpu.assume_multiple %19, 128 : i32
    %c0_8 = arith.constant 0 : index
    %c0_9 = arith.constant 0 : index
    %21 = arith.index_cast %20 : i32 to index
    %22 = vector.load %arg0[%c0_8, %c0_9, %21] : memref<2x64x2250xbf16, #tpu.memory_space<vmem>>, vector<2x64x128xbf16>
    %23 = arith.extf %22 : vector<2x64x128xbf16> to vector<2x64x128xf32>
    %24 = arith.addf %18, %23 : vector<2x64x128xf32>
    %c4_i32 = arith.constant 4 : i32
    %c128_i32_10 = arith.constant 128 : i32
    %25 = arith.muli %c4_i32, %c128_i32_10 : i32
    %26 = tpu.assume_multiple %25, 128 : i32
    %c0_11 = arith.constant 0 : index
    %c0_12 = arith.constant 0 : index
    %27 = arith.index_cast %26 : i32 to index
    %28 = vector.load %arg0[%c0_11, %c0_12, %27] : memref<2x64x2250xbf16, #tpu.memory_space<vmem>>, vector<2x64x128xbf16>
    %29 = arith.extf %28 : vector<2x64x128xbf16> to vector<2x64x128xf32>
    %30 = arith.addf %24, %29 : vector<2x64x128xf32>
    %c5_i32 = arith.constant 5 : i32
    %c128_i32_13 = arith.constant 128 : i32
    %31 = arith.muli %c5_i32, %c128_i32_13 : i32
    %32 = tpu.assume_multiple %31, 128 : i32
    %c0_14 = arith.constant 0 : index
    %c0_15 = arith.constant 0 : index
    %33 = arith.index_cast %32 : i32 to index
    %34 = vector.load %arg0[%c0_14, %c0_15, %33] : memref<2x64x2250xbf16, #tpu.memory_space<vmem>>, vector<2x64x128xbf16>
    %35 = arith.extf %34 : vector<2x64x128xbf16> to vector<2x64x128xf32>
    %36 = arith.addf %30, %35 : vector<2x64x128xf32>
    %c6_i32 = arith.constant 6 : i32
    %c128_i32_16 = arith.constant 128 : i32
    %37 = arith.muli %c6_i32, %c128_i32_16 : i32
    %38 = tpu.assume_multiple %37, 128 : i32
    %c0_17 = arith.constant 0 : index
    %c0_18 = arith.constant 0 : index
    %39 = arith.index_cast %38 : i32 to index
    %40 = vector.load %arg0[%c0_17, %c0_18, %39] : memref<2x64x2250xbf16, #tpu.memory_space<vmem>>, vector<2x64x128xbf16>
    %41 = arith.extf %40 : vector<2x64x128xbf16> to vector<2x64x128xf32>
    %42 = arith.addf %36, %41 : vector<2x64x128xf32>
    %c7_i32 = arith.constant 7 : i32
    %c128_i32_19 = arith.constant 128 : i32
    %43 = arith.muli %c7_i32, %c128_i32_19 : i32
    %44 = tpu.assume_multiple %43, 128 : i32
    %c0_20 = arith.constant 0 : index
    %c0_21 = arith.constant 0 : index
    %45 = arith.index_cast %44 : i32 to index
    %46 = vector.load %arg0[%c0_20, %c0_21, %45] : memref<2x64x2250xbf16, #tpu.memory_space<vmem>>, vector<2x64x128xbf16>
    %47 = arith.extf %46 : vector<2x64x128xbf16> to vector<2x64x128xf32>
    %48 = arith.addf %42, %47 : vector<2x64x128xf32>
    %c8_i32 = arith.constant 8 : i32
    %c128_i32_22 = arith.constant 128 : i32
    %49 = arith.muli %c8_i32, %c128_i32_22 : i32
    %50 = tpu.assume_multiple %49, 128 : i32
    %c0_23 = arith.constant 0 : index
    %c0_24 = arith.constant 0 : index
    %51 = arith.index_cast %50 : i32 to index
    %52 = vector.load %arg0[%c0_23, %c0_24, %51] : memref<2x64x2250xbf16, #tpu.memory_space<vmem>>, vector<2x64x128xbf16>
    %53 = arith.extf %52 : vector<2x64x128xbf16> to vector<2x64x128xf32>
    %54 = arith.addf %48, %53 : vector<2x64x128xf32>
    %c9_i32 = arith.constant 9 : i32
    %c128_i32_25 = arith.constant 128 : i32
    %55 = arith.muli %c9_i32, %c128_i32_25 : i32
    %56 = tpu.assume_multiple %55, 128 : i32
    %c0_26 = arith.constant 0 : index
    %c0_27 = arith.constant 0 : index
    %57 = arith.index_cast %56 : i32 to index
    %58 = vector.load %arg0[%c0_26, %c0_27, %57] : memref<2x64x2250xbf16, #tpu.memory_space<vmem>>, vector<2x64x128xbf16>
    %59 = arith.extf %58 : vector<2x64x128xbf16> to vector<2x64x128xf32>
    %60 = arith.addf %54, %59 : vector<2x64x128xf32>
    %c10_i32 = arith.constant 10 : i32
    %c128_i32_28 = arith.constant 128 : i32
    %61 = arith.muli %c10_i32, %c128_i32_28 : i32
    %62 = tpu.assume_multiple %61, 128 : i32
    %c0_29 = arith.constant 0 : index
    %c0_30 = arith.constant 0 : index
    %63 = arith.index_cast %62 : i32 to index
    %64 = vector.load %arg0[%c0_29, %c0_30, %63] : memref<2x64x2250xbf16, #tpu.memory_space<vmem>>, vector<2x64x128xbf16>
    %65 = arith.extf %64 : vector<2x64x128xbf16> to vector<2x64x128xf32>
    %66 = arith.addf %60, %65 : vector<2x64x128xf32>
    %c11_i32 = arith.constant 11 : i32
    %c128_i32_31 = arith.constant 128 : i32
    %67 = arith.muli %c11_i32, %c128_i32_31 : i32
    %68 = tpu.assume_multiple %67, 128 : i32
    %c0_32 = arith.constant 0 : index
    %c0_33 = arith.constant 0 : index
    %69 = arith.index_cast %68 : i32 to index
    %70 = vector.load %arg0[%c0_32, %c0_33, %69] : memref<2x64x2250xbf16, #tpu.memory_space<vmem>>, vector<2x64x128xbf16>
    %71 = arith.extf %70 : vector<2x64x128xbf16> to vector<2x64x128xf32>
    %72 = arith.addf %66, %71 : vector<2x64x128xf32>
    %c12_i32 = arith.constant 12 : i32
    %c128_i32_34 = arith.constant 128 : i32
    %73 = arith.muli %c12_i32, %c128_i32_34 : i32
    %74 = tpu.assume_multiple %73, 128 : i32
    %c0_35 = arith.constant 0 : index
    %c0_36 = arith.constant 0 : index
    %75 = arith.index_cast %74 : i32 to index
    %76 = vector.load %arg0[%c0_35, %c0_36, %75] : memref<2x64x2250xbf16, #tpu.memory_space<vmem>>, vector<2x64x128xbf16>
    %77 = arith.extf %76 : vector<2x64x128xbf16> to vector<2x64x128xf32>
    %78 = arith.addf %72, %77 : vector<2x64x128xf32>
    %c13_i32 = arith.constant 13 : i32
    %c128_i32_37 = arith.constant 128 : i32
    %79 = arith.muli %c13_i32, %c128_i32_37 : i32
    %80 = tpu.assume_multiple %79, 128 : i32
    %c0_38 = arith.constant 0 : index
    %c0_39 = arith.constant 0 : index
    %81 = arith.index_cast %80 : i32 to index
    %82 = vector.load %arg0[%c0_38, %c0_39, %81] : memref<2x64x2250xbf16, #tpu.memory_space<vmem>>, vector<2x64x128xbf16>
    %83 = arith.extf %82 : vector<2x64x128xbf16> to vector<2x64x128xf32>
    %84 = arith.addf %78, %83 : vector<2x64x128xf32>
    %c14_i32 = arith.constant 14 : i32
    %c128_i32_40 = arith.constant 128 : i32
    %85 = arith.muli %c14_i32, %c128_i32_40 : i32
    %86 = tpu.assume_multiple %85, 128 : i32
    %c0_41 = arith.constant 0 : index
    %c0_42 = arith.constant 0 : index
    %87 = arith.index_cast %86 : i32 to index
    %88 = vector.load %arg0[%c0_41, %c0_42, %87] : memref<2x64x2250xbf16, #tpu.memory_space<vmem>>, vector<2x64x128xbf16>
    %89 = arith.extf %88 : vector<2x64x128xbf16> to vector<2x64x128xf32>
    %90 = arith.addf %84, %89 : vector<2x64x128xf32>
    %c15_i32 = arith.constant 15 : i32
    %c128_i32_43 = arith.constant 128 : i32
    %91 = arith.muli %c15_i32, %c128_i32_43 : i32
    %92 = tpu.assume_multiple %91, 128 : i32
    %c0_44 = arith.constant 0 : index
    %c0_45 = arith.constant 0 : index
    %93 = arith.index_cast %92 : i32 to index
    %94 = vector.load %arg0[%c0_44, %c0_45, %93] : memref<2x64x2250xbf16, #tpu.memory_space<vmem>>, vector<2x64x128xbf16>
    %95 = arith.extf %94 : vector<2x64x128xbf16> to vector<2x64x128xf32>
    %96 = arith.addf %90, %95 : vector<2x64x128xf32>
    %c16_i32 = arith.constant 16 : i32
    %c128_i32_46 = arith.constant 128 : i32
    %97 = arith.muli %c16_i32, %c128_i32_46 : i32
    %98 = tpu.assume_multiple %97, 128 : i32
    %c0_47 = arith.constant 0 : index
    %c0_48 = arith.constant 0 : index
    %99 = arith.index_cast %98 : i32 to index
    %100 = vector.load %arg0[%c0_47, %c0_48, %99] : memref<2x64x2250xbf16, #tpu.memory_space<vmem>>, vector<2x64x128xbf16>
    %101 = arith.extf %100 : vector<2x64x128xbf16> to vector<2x64x128xf32>
    %102 = arith.addf %96, %101 : vector<2x64x128xf32>
    %c17_i32 = arith.constant 17 : i32
    %cst_49 = arith.constant dense<0.000000e+00> : vector<2x64xf32>
    %103 = vector.multi_reduction <add>, %102, %cst_49 [2] : vector<2x64x128xf32> to vector<2x64xf32>
    %c0_50 = arith.constant 0 : index
    %c0_51 = arith.constant 0 : index
    %c2176 = arith.constant 2176 : index
    %104 = vector.load %arg0[%c0_50, %c0_51, %c2176] : memref<2x64x2250xbf16, #tpu.memory_space<vmem>>, vector<2x64x74xbf16>
    %105 = arith.extf %104 : vector<2x64x74xbf16> to vector<2x64x74xf32>
    %cst_52 = arith.constant dense<0.000000e+00> : vector<2x64xf32>
    %106 = vector.multi_reduction <add>, %105, %cst_52 [2] : vector<2x64x74xf32> to vector<2x64xf32>
    %107 = arith.addf %103, %106 : vector<2x64xf32>
    %cst_53 = arith.constant 4.44444449E-4 : f32
    %108 = vector.broadcast %cst_53 : f32 to vector<2x64xf32>
    %109 = arith.mulf %107, %108 : vector<2x64xf32>
    %c0_54 = arith.constant 0 : index
    %c0_55 = arith.constant 0 : index
    %110 = vector.load %arg1[%c0_54, %c0_55] : memref<64x64xf32, #tpu.memory_space<vmem>>, vector<64x64xf32>
    %cst_56 = arith.constant dense<0.000000e+00> : vector<2x64xf32>
    %111 = tpu.matmul %109, %110, %cst_56 {dimension_numbers = #tpu.dot_dimension_numbers<[1], [0], [0], [1], [0, 0, 1, 1], [], []>} : vector<2x64xf32>, vector<64x64xf32>, vector<2x64xf32> -> vector<2x64xf32>
    %c0_57 = arith.constant 0 : index
    %c0_58 = arith.constant 0 : index
    %112 = vector.load %arg2[%c0_57, %c0_58] : memref<1x64xf32, #tpu.memory_space<vmem>>, vector<1x64xf32>
    %113 = vector.broadcast %112 : vector<1x64xf32> to vector<2x64xf32>
    %114 = arith.addf %111, %113 : vector<2x64xf32>
    %cst_59 = arith.constant dense<0.000000e+00> : vector<2xf32>
    %115 = vector.multi_reduction <add>, %114, %cst_59 [1] : vector<2x64xf32> to vector<2xf32>
    %116 = vector.shape_cast %115 : vector<2xf32> to vector<2x1xf32>
    %cst_60 = arith.constant 6.400000e+01 : f32
    %117 = vector.broadcast %cst_60 : f32 to vector<2x1xf32>
    %118 = arith.divf %116, %117 : vector<2x1xf32>
    %119 = vector.broadcast %118 : vector<2x1xf32> to vector<2x64xf32>
    %120 = arith.subf %114, %119 : vector<2x64xf32>
    %121 = arith.mulf %120, %120 : vector<2x64xf32>
    %cst_61 = arith.constant dense<0.000000e+00> : vector<2xf32>
    %122 = vector.multi_reduction <add>, %121, %cst_61 [1] : vector<2x64xf32> to vector<2xf32>
    %123 = vector.shape_cast %122 : vector<2xf32> to vector<2x1xf32>
    %cst_62 = arith.constant 6.400000e+01 : f32
    %124 = vector.broadcast %cst_62 : f32 to vector<2x1xf32>
    %125 = arith.divf %123, %124 : vector<2x1xf32>
    %126 = vector.broadcast %118 : vector<2x1xf32> to vector<2x64xf32>
    %127 = arith.subf %114, %126 : vector<2x64xf32>
    %cst_63 = arith.constant 9.99999974E-6 : f32
    %128 = vector.broadcast %cst_63 : f32 to vector<2x1xf32>
    %129 = arith.addf %125, %128 : vector<2x1xf32>
    %130 = math.rsqrt %129 : vector<2x1xf32>
    %131 = vector.broadcast %130 : vector<2x1xf32> to vector<2x64xf32>
    %132 = arith.mulf %127, %131 : vector<2x64xf32>
    %cst_64 = arith.constant 0.000000e+00 : f32
    %133 = vector.broadcast %cst_64 : f32 to vector<2x64xf32>
    %134 = arith.maximumf %132, %133 : vector<2x64xf32>
    %c0_65 = arith.constant 0 : index
    %c0_66 = arith.constant 0 : index
    %135 = vector.load %arg3[%c0_65, %c0_66] : memref<64x64xf32, #tpu.memory_space<vmem>>, vector<64x64xf32>
    %cst_67 = arith.constant dense<0.000000e+00> : vector<2x64xf32>
    %136 = tpu.matmul %134, %135, %cst_67 {dimension_numbers = #tpu.dot_dimension_numbers<[1], [0], [0], [1], [0, 0, 1, 1], [], []>} : vector<2x64xf32>, vector<64x64xf32>, vector<2x64xf32> -> vector<2x64xf32>
    %c0_68 = arith.constant 0 : index
    %c0_69 = arith.constant 0 : index
    %137 = vector.load %arg4[%c0_68, %c0_69] : memref<2x64xf32, #tpu.memory_space<vmem>>, vector<2x64xf32>
    tpu.vector_store %arg4[%c0_68, %c0_69], %136 {strides = array<i32>} : memref<2x64xf32, #tpu.memory_space<vmem>>, vector<2x64xf32>,
    return
  }
}

</mosaic_0001>

<llo_original>
// kernel: tpu_custom_call.1
$region0: #{tpu_custom_call.1}
  #allocation0 [shape = 'u32[]', space=smem, size = 0x4, offset = 0x4, fixed_abs, tag = 'smem constant byte address 0x4 - core index']
  #allocation1 [shape = 'u32[144,128]{1,0:T(1,128)}', space=vmem, size = 0x12000, scoped, tag = 'internal scratch']
  %s0 = inlined_call_operand.hbm [shape: bf16[2,64,2250], index: 0, kind: input, shape index: {}]
  %s1 = inlined_call_operand.hbm [shape: f32[64,64], index: 1, kind: input, shape index: {}]
  %s2 = inlined_call_operand.vmem [shape: f32[1,64], index: 2, kind: input, shape index: {}]
  %s3 = inlined_call_operand.hbm [shape: f32[64,64], index: 3, kind: input, shape index: {}]
  %s4 = inlined_call_operand.hbm [shape: f32[2,64], index: 4, kind: output, shape index: {}]
  %s5 = sld [smem:[#allocation0]]
  $region38: #{tpu_custom_call.1} parent=0
    _
  %s7 = ssub.s32 1, %s5
  %s8 = scalar_select 0, %s7, %s5
  $region1: #{tpu_custom_call.1} parent=0
    #allocation2 [shape = 'u8[589824]{0}', space=vmem, size = 0x90000, scoped, tag = 'input window, operand 0, single buffered']
    #allocation3 [shape = 's32[1]{0}', space=sflag, size = 0x4, scoped, tag = 'scoped memory for tpu_custom_call.1']
    #allocation4 [shape = 's32[1]{0}', space=sflag, size = 0x4, scoped, tag = 'scoped memory for tpu_custom_call.1']
    #allocation5 [shape = 'u8[32768]{0}', space=vmem, size = 0x8000, scoped, tag = 'input window, operand 1, single buffered']
    #allocation6 [shape = 's32[1]{0}', space=sflag, size = 0x4, scoped, tag = 'scoped memory for tpu_custom_call.1']
    #allocation7 [shape = 'u8[32768]{0}', space=vmem, size = 0x8000, scoped, tag = 'input window, operand 3, single buffered']
    #allocation8 [shape = 'u8[1024]{0}', space=vmem, size = 0x400, scoped, tag = 'output window, operand 0, single buffered']
    %9 = vsyncpa [#allocation3], 0
    %10 = vsyncpa [#allocation6], 0
    %11 = vsyncpa [#allocation4], 0
    // Predicated region
    $region2: #{tpu_custom_call.1} parent=1 // pred_check
      _
    $region3: #{tpu_custom_call.1} parent=1 // pred_check_branch
      %13 = sbr.rel (0) target = $region5
    $region4: #{tpu_custom_call.1} parent=1 // pred_region
      %s15 = ssub.s32 18432, 18432
      %16 = vsyncadd [#allocation3], %s15
      %s17 = sshll.u32 [#allocation2], 4
      %s18 = int_to_ptr.vmem [resolvable:$true] %s17
      %23 = dma.hbm_to_vmem [thread:$0]  %s0, 18432, %s18, [#allocation3], 1152, 1152, 72
    $region5: #{tpu_custom_call.1} parent=1 // pred_fallthru
      _
    // Predicated region
    $region6: #{tpu_custom_call.1} parent=1 // pred_check
      _
    $region7: #{tpu_custom_call.1} parent=1 // pred_check_branch
      %25 = sbr.rel (0) target = $region9
    $region8: #{tpu_custom_call.1} parent=1 // pred_region
      %s27 = ssub.s32 1024, 1024
      %28 = vsyncadd [#allocation6], %s27
      %s29 = sshll.u32 [#allocation5], 4
      %s30 = int_to_ptr.vmem [resolvable:$true] %s29
      %35 = dma.hbm_to_vmem [thread:$0]  %s1, 1024, %s30, [#allocation6], 128, 128, 8
    $region9: #{tpu_custom_call.1} parent=1 // pred_fallthru
      _
    // Predicated region
    $region10: #{tpu_custom_call.1} parent=1 // pred_check
      _
    $region11: #{tpu_custom_call.1} parent=1 // pred_check_branch
      %37 = sbr.rel (0) target = $region13
    $region12: #{tpu_custom_call.1} parent=1 // pred_region
      _
    $region13: #{tpu_custom_call.1} parent=1 // pred_fallthru
      _
    // Predicated region
    $region14: #{tpu_custom_call.1} parent=1 // pred_check
      _
    $region15: #{tpu_custom_call.1} parent=1 // pred_check_branch
      %39 = sbr.rel (0) target = $region17
    $region16: #{tpu_custom_call.1} parent=1 // pred_region
      %s41 = ssub.s32 1024, 1024
      %42 = vsyncadd [#allocation6], %s41
      %s43 = sshll.u32 [#allocation7], 4
      %s44 = int_to_ptr.vmem [resolvable:$true] %s43
      %49 = dma.hbm_to_vmem [thread:$0]  %s3, 1024, %s44, [#allocation6], 128, 128, 8
    $region17: #{tpu_custom_call.1} parent=1 // pred_fallthru
      _
    // Predicated region
    $region18: #{tpu_custom_call.1} parent=1 // pred_check
      _
    $region19: #{tpu_custom_call.1} parent=1 // pred_check_branch
      %51 = sbr.rel (0) target = $region21
    $region20: #{tpu_custom_call.1} parent=1 // pred_region
      %52 = dma.done [#allocation3], 18432
    $region21: #{tpu_custom_call.1} parent=1 // pred_fallthru
      _
    // Predicated region
    $region22: #{tpu_custom_call.1} parent=1 // pred_check
      _
    $region23: #{tpu_custom_call.1} parent=1 // pred_check_branch
      %54 = sbr.rel (0) target = $region25
    $region24: #{tpu_custom_call.1} parent=1 // pred_region
      %55 = dma.done [#allocation6], 1024
    $region25: #{tpu_custom_call.1} parent=1 // pred_fallthru
      _
    // Predicated region
    $region26: #{tpu_custom_call.1} parent=1 // pred_check
      _
    $region27: #{tpu_custom_call.1} parent=1 // pred_check_branch
      %57 = sbr.rel (0) target = $region29
    $region28: #{tpu_custom_call.1} parent=1 // pred_region
      %58 = dma.done [#allocation6], 1024
    $region29: #{tpu_custom_call.1} parent=1 // pred_fallthru
      _
    %v59 = vld [vmem:[#allocation2] sm:$0xf]
    %v60 = vld [vmem:[#allocation2 + $0x48] sm:$0xf]
    %v61 = vld [vmem:[#allocation2 + $0x90] sm:$0xf]
    %v62 = vld [vmem:[#allocation2 + $0xd8] sm:$0xf]
    %v63 = vld [vmem:[#allocation2 + $0x120] sm:$0xf]
    %v64 = vld [vmem:[#allocation2 + $0x168] sm:$0xf]
    %v65 = vld [vmem:[#allocation2 + $0x1b0] sm:$0xf]
    %v66 = vld [vmem:[#allocation2 + $0x1f8] sm:$0xf]
    %v67 = vld [vmem:[#allocation2 + $0x240] sm:$0xf]
    %v68 = vld [vmem:[#allocation2 + $0x288] sm:$0xf]
    %v69 = vld [vmem:[#allocation2 + $0x2d0] sm:$0xf]
    %v70 = vld [vmem:[#allocation2 + $0x318] sm:$0xf]
    %v71 = vld [vmem:[#allocation2 + $0x360] sm:$0xf]
    %v72 = vld [vmem:[#allocation2 + $0x3a8] sm:$0xf]
    %v73 = vld [vmem:[#allocation2 + $0x3f0] sm:$0xf]
    %v74 = vld [vmem:[#allocation2 + $0x438] sm:$0xf]
    %v75 = vunpack.c.l.bf16 %v59
    %v76 = vunpack.c.l.bf16 %v60
    %v77 = vunpack.c.l.bf16 %v61
    %v78 = vunpack.c.l.bf16 %v62
    %v79 = vunpack.c.l.bf16 %v63
    %v80 = vunpack.c.l.bf16 %v64
    %v81 = vunpack.c.l.bf16 %v65
    %v82 = vunpack.c.l.bf16 %v66
    %v83 = vunpack.c.l.bf16 %v67
    %v84 = vunpack.c.l.bf16 %v68
    %v85 = vunpack.c.l.bf16 %v69
    %v86 = vunpack.c.l.bf16 %v70
    %v87 = vunpack.c.l.bf16 %v71
    %v88 = vunpack.c.l.bf16 %v72
    %v89 = vunpack.c.l.bf16 %v73
    %v90 = vunpack.c.l.bf16 %v74
    %v91 = vadd.f32 %v75, 0.0
    %v92 = vadd.f32 %v76, 0.0
    %v93 = vadd.f32 %v77, 0.0
    %v94 = vadd.f32 %v78, 0.0
    %v95 = vadd.f32 %v79, 0.0
    %v96 = vadd.f32 %v80, 0.0
    %v97 = vadd.f32 %v81, 0.0
    %v98 = vadd.f32 %v82, 0.0
    %v99 = vadd.f32 %v83, 0.0
    %v100 = vadd.f32 %v84, 0.0
    %v101 = vadd.f32 %v85, 0.0
    %v102 = vadd.f32 %v86, 0.0
    %v103 = vadd.f32 %v87, 0.0
    %v104 = vadd.f32 %v88, 0.0
    %v105 = vadd.f32 %v89, 0.0
    %v106 = vadd.f32 %v90, 0.0
    %s107 = scalar_lea.vmem [#allocation2], 4
    %v108 = vld [vmem:[%s107] sm:$0xf]
    %v109 = vld [vmem:[%s107 + $0x48] sm:$0xf]
    %v110 = vld [vmem:[%s107 + $0x90] sm:$0xf]
    %v111 = vld [vmem:[%s107 + $0xd8] sm:$0xf]
    %v112 = vld [vmem:[%s107 + $0x120] sm:$0xf]
    %v113 = vld [vmem:[%s107 + $0x168] sm:$0xf]
    %v114 = vld [vmem:[%s107 + $0x1b0] sm:$0xf]
    %v115 = vld [vmem:[%s107 + $0x1f8] sm:$0xf]
    %v116 = vld [vmem:[%s107 + $0x240] sm:$0xf]
    %v117 = vld [vmem:[%s107 + $0x288] sm:$0xf]
    %v118 = vld [vmem:[%s107 + $0x2d0] sm:$0xf]
    %v119 = vld [vmem:[%s107 + $0x318] sm:$0xf]
    %v120 = vld [vmem:[%s107 + $0x360] sm:$0xf]
    %v121 = vld [vmem:[%s107 + $0x3a8] sm:$0xf]
    %v122 = vld [vmem:[%s107 + $0x3f0] sm:$0xf]
    %v123 = vld [vmem:[%s107 + $0x438] sm:$0xf]
    %v124 = vunpack.c.l.bf16 %v108
    %v125 = vunpack.c.l.bf16 %v109
    %v126 = vunpack.c.l.bf16 %v110
    %v127 = vunpack.c.l.bf16 %v111
    %v128 = vunpack.c.l.bf16 %v112
    %v129 = vunpack.c.l.bf16 %v113
    %v130 = vunpack.c.l.bf16 %v114
    %v131 = vunpack.c.l.bf16 %v115
    %v132 = vunpack.c.l.bf16 %v116
    %v133 = vunpack.c.l.bf16 %v117
    %v134 = vunpack.c.l.bf16 %v118
    %v135 = vunpack.c.l.bf16 %v119
    %v136 = vunpack.c.l.bf16 %v120
    %v137 = vunpack.c.l.bf16 %v121
    %v138 = vunpack.c.l.bf16 %v122
    %v139 = vunpack.c.l.bf16 %v123
    %v140 = vadd.f32 %v91, %v124
    %v141 = vadd.f32 %v92, %v125
    %v142 = vadd.f32 %v93, %v126
    %v143 = vadd.f32 %v94, %v127
    %v144 = vadd.f32 %v95, %v128
    %v145 = vadd.f32 %v96, %v129
    %v146 = vadd.f32 %v97, %v130
    %v147 = vadd.f32 %v98, %v131
    %v148 = vadd.f32 %v99, %v132
    %v149 = vadd.f32 %v100, %v133
    %v150 = vadd.f32 %v101, %v134
    %v151 = vadd.f32 %v102, %v135
    %v152 = vadd.f32 %v103, %v136
    %v153 = vadd.f32 %v104, %v137
    %v154 = vadd.f32 %v105, %v138
    %v155 = vadd.f32 %v106, %v139
    %s156 = scalar_lea.vmem [#allocation2], 8
    %v157 = vld [vmem:[%s156] sm:$0xf]
    %v158 = vld [vmem:[%s156 + $0x48] sm:$0xf]
    %v159 = vld [vmem:[%s156 + $0x90] sm:$0xf]
    %v160 = vld [vmem:[%s156 + $0xd8] sm:$0xf]
    %v161 = vld [vmem:[%s156 + $0x120] sm:$0xf]
    %v162 = vld [vmem:[%s156 + $0x168] sm:$0xf]
    %v163 = vld [vmem:[%s156 + $0x1b0] sm:$0xf]
    %v164 = vld [vmem:[%s156 + $0x1f8] sm:$0xf]
    %v165 = vld [vmem:[%s156 + $0x240] sm:$0xf]
    %v166 = vld [vmem:[%s156 + $0x288] sm:$0xf]
    %v167 = vld [vmem:[%s156 + $0x2d0] sm:$0xf]
    %v168 = vld [vmem:[%s156 + $0x318] sm:$0xf]
    %v169 = vld [vmem:[%s156 + $0x360] sm:$0xf]
    %v170 = vld [vmem:[%s156 + $0x3a8] sm:$0xf]
    %v171 = vld [vmem:[%s156 + $0x3f0] sm:$0xf]
    %v172 = vld [vmem:[%s156 + $0x438] sm:$0xf]
    %v173 = vunpack.c.l.bf16 %v157
    %v174 = vunpack.c.l.bf16 %v158
    %v175 = vunpack.c.l.bf16 %v159
    %v176 = vunpack.c.l.bf16 %v160
    %v177 = vunpack.c.l.bf16 %v161
    %v178 = vunpack.c.l.bf16 %v162
    %v179 = vunpack.c.l.bf16 %v163
    %v180 = vunpack.c.l.bf16 %v164
    %v181 = vunpack.c.l.bf16 %v165
    %v182 = vunpack.c.l.bf16 %v166
    %v183 = vunpack.c.l.bf16 %v167
    %v184 = vunpack.c.l.bf16 %v168
    %v185 = vunpack.c.l.bf16 %v169
    %v186 = vunpack.c.l.bf16 %v170
    %v187 = vunpack.c.l.bf16 %v171
    %v188 = vunpack.c.l.bf16 %v172
    %v189 = vadd.f32 %v140, %v173
    %v190 = vadd.f32 %v141, %v174
    %v191 = vadd.f32 %v142, %v175
    %v192 = vadd.f32 %v143, %v176
    %v193 = vadd.f32 %v144, %v177
    %v194 = vadd.f32 %v145, %v178
    %v195 = vadd.f32 %v146, %v179
    %v196 = vadd.f32 %v147, %v180
    %v197 = vadd.f32 %v148, %v181
    %v198 = vadd.f32 %v149, %v182
    %v199 = vadd.f32 %v150, %v183
    %v200 = vadd.f32 %v151, %v184
    %v201 = vadd.f32 %v152, %v185
    %v202 = vadd.f32 %v153, %v186
    %v203 = vadd.f32 %v154, %v187
    %v204 = vadd.f32 %v155, %v188
    %s205 = scalar_lea.vmem [#allocation2], 12
    %v206 = vld [vmem:[%s205] sm:$0xf]
    %v207 = vld [vmem:[%s205 + $0x48] sm:$0xf]
    %v208 = vld [vmem:[%s205 + $0x90] sm:$0xf]
    %v209 = vld [vmem:[%s205 + $0xd8] sm:$0xf]
    %v210 = vld [vmem:[%s205 + $0x120] sm:$0xf]
    %v211 = vld [vmem:[%s205 + $0x168] sm:$0xf]
    %v212 = vld [vmem:[%s205 + $0x1b0] sm:$0xf]
    %v213 = vld [vmem:[%s205 + $0x1f8] sm:$0xf]
    %v214 = vld [vmem:[%s205 + $0x240] sm:$0xf]
    %v215 = vld [vmem:[%s205 + $0x288] sm:$0xf]
    %v216 = vld [vmem:[%s205 + $0x2d0] sm:$0xf]
    %v217 = vld [vmem:[%s205 + $0x318] sm:$0xf]
    %v218 = vld [vmem:[%s205 + $0x360] sm:$0xf]
    %v219 = vld [vmem:[%s205 + $0x3a8] sm:$0xf]
    %v220 = vld [vmem:[%s205 + $0x3f0] sm:$0xf]
    %v221 = vld [vmem:[%s205 + $0x438] sm:$0xf]
    %v222 = vunpack.c.l.bf16 %v206
    %v223 = vunpack.c.l.bf16 %v207
    %v224 = vunpack.c.l.bf16 %v208
    %v225 = vunpack.c.l.bf16 %v209
    %v226 = vunpack.c.l.bf16 %v210
    %v227 = vunpack.c.l.bf16 %v211
    %v228 = vunpack.c.l.bf16 %v212
    %v229 = vunpack.c.l.bf16 %v213
    %v230 = vunpack.c.l.bf16 %v214
    %v231 = vunpack.c.l.bf16 %v215
    %v232 = vunpack.c.l.bf16 %v216
    %v233 = vunpack.c.l.bf16 %v217
    %v234 = vunpack.c.l.bf16 %v218
    %v235 = vunpack.c.l.bf16 %v219
    %v236 = vunpack.c.l.bf16 %v220
    %v237 = vunpack.c.l.bf16 %v221
    %v238 = vadd.f32 %v189, %v222
    %v239 = vadd.f32 %v190, %v223
    %v240 = vadd.f32 %v191, %v224
    %v241 = vadd.f32 %v192, %v225
    %v242 = vadd.f32 %v193, %v226
    %v243 = vadd.f32 %v194, %v227
    %v244 = vadd.f32 %v195, %v228
    %v245 = vadd.f32 %v196, %v229
    %v246 = vadd.f32 %v197, %v230
    %v247 = vadd.f32 %v198, %v231
    %v248 = vadd.f32 %v199, %v232
    %v249 = vadd.f32 %v200, %v233
    %v250 = vadd.f32 %v201, %v234
    %v251 = vadd.f32 %v202, %v235
    %v252 = vadd.f32 %v203, %v236
    %v253 = vadd.f32 %v204, %v237
    %s254 = scalar_lea.vmem [#allocation2], 16
    %v255 = vld [vmem:[%s254] sm:$0xf]
    %v256 = vld [vmem:[%s254 + $0x48] sm:$0xf]
    %v257 = vld [vmem:[%s254 + $0x90] sm:$0xf]
    %v258 = vld [vmem:[%s254 + $0xd8] sm:$0xf]
    %v259 = vld [vmem:[%s254 + $0x120] sm:$0xf]
    %v260 = vld [vmem:[%s254 + $0x168] sm:$0xf]
    %v261 = vld [vmem:[%s254 + $0x1b0] sm:$0xf]
    %v262 = vld [vmem:[%s254 + $0x1f8] sm:$0xf]
    %v263 = vld [vmem:[%s254 + $0x240] sm:$0xf]
    %v264 = vld [vmem:[%s254 + $0x288] sm:$0xf]
    %v265 = vld [vmem:[%s254 + $0x2d0] sm:$0xf]
    %v266 = vld [vmem:[%s254 + $0x318] sm:$0xf]
    %v267 = vld [vmem:[%s254 + $0x360] sm:$0xf]
    %v268 = vld [vmem:[%s254 + $0x3a8] sm:$0xf]
    %v269 = vld [vmem:[%s254 + $0x3f0] sm:$0xf]
    %v270 = vld [vmem:[%s254 + $0x438] sm:$0xf]
    %v271 = vunpack.c.l.bf16 %v255
    %v272 = vunpack.c.l.bf16 %v256
    %v273 = vunpack.c.l.bf16 %v257
    %v274 = vunpack.c.l.bf16 %v258
    %v275 = vunpack.c.l.bf16 %v259
    %v276 = vunpack.c.l.bf16 %v260
    %v277 = vunpack.c.l.bf16 %v261
    %v278 = vunpack.c.l.bf16 %v262
    %v279 = vunpack.c.l.bf16 %v263
    %v280 = vunpack.c.l.bf16 %v264
    %v281 = vunpack.c.l.bf16 %v265
    %v282 = vunpack.c.l.bf16 %v266
    %v283 = vunpack.c.l.bf16 %v267
    %v284 = vunpack.c.l.bf16 %v268
    %v285 = vunpack.c.l.bf16 %v269
    %v286 = vunpack.c.l.bf16 %v270
    %v287 = vadd.f32 %v238, %v271
    %v288 = vadd.f32 %v239, %v272
    %v289 = vadd.f32 %v240, %v273
    %v290 = vadd.f32 %v241, %v274
    %v291 = vadd.f32 %v242, %v275
    %v292 = vadd.f32 %v243, %v276
    %v293 = vadd.f32 %v244, %v277
    %v294 = vadd.f32 %v245, %v278
    %v295 = vadd.f32 %v246, %v279
    %v296 = vadd.f32 %v247, %v280
    %v297 = vadd.f32 %v248, %v281
    %v298 = vadd.f32 %v249, %v282
    %v299 = vadd.f32 %v250, %v283
    %v300 = vadd.f32 %v251, %v284
    %v301 = vadd.f32 %v252, %v285
    %v302 = vadd.f32 %v253, %v286
    %s303 = scalar_lea.vmem [#allocation2], 20
    %v304 = vld [vmem:[%s303] sm:$0xf]
    %v305 = vld [vmem:[%s303 + $0x48] sm:$0xf]
    %v306 = vld [vmem:[%s303 + $0x90] sm:$0xf]
    %v307 = vld [vmem:[%s303 + $0xd8] sm:$0xf]
    %v308 = vld [vmem:[%s303 + $0x120] sm:$0xf]
    %v309 = vld [vmem:[%s303 + $0x168] sm:$0xf]
    %v310 = vld [vmem:[%s303 + $0x1b0] sm:$0xf]
    %v311 = vld [vmem:[%s303 + $0x1f8] sm:$0xf]
    %v312 = vld [vmem:[%s303 + $0x240] sm:$0xf]
    %v313 = vld [vmem:[%s303 + $0x288] sm:$0xf]
    %v314 = vld [vmem:[%s303 + $0x2d0] sm:$0xf]
    %v315 = vld [vmem:[%s303 + $0x318] sm:$0xf]
    %v316 = vld [vmem:[%s303 + $0x360] sm:$0xf]
    %v317 = vld [vmem:[%s303 + $0x3a8] sm:$0xf]
    %v318 = vld [vmem:[%s303 + $0x3f0] sm:$0xf]
    %v319 = vld [vmem:[%s303 + $0x438] sm:$0xf]
    %v320 = vunpack.c.l.bf16 %v304
    %v321 = vunpack.c.l.bf16 %v305
    %v322 = vunpack.c.l.bf16 %v306
    %v323 = vunpack.c.l.bf16 %v307
    %v324 = vunpack.c.l.bf16 %v308
    %v325 = vunpack.c.l.bf16 %v309
    %v326 = vunpack.c.l.bf16 %v310
    %v327 = vunpack.c.l.bf16 %v311
    %v328 = vunpack.c.l.bf16 %v312
    %v329 = vunpack.c.l.bf16 %v313
    %v330 = vunpack.c.l.bf16 %v314
    %v331 = vunpack.c.l.bf16 %v315
    %v332 = vunpack.c.l.bf16 %v316
    %v333 = vunpack.c.l.bf16 %v317
    %v334 = vunpack.c.l.bf16 %v318
    %v335 = vunpack.c.l.bf16 %v319
    %v336 = vadd.f32 %v287, %v320
    %v337 = vadd.f32 %v288, %v321
    %v338 = vadd.f32 %v289, %v322
    %v339 = vadd.f32 %v290, %v323
    %v340 = vadd.f32 %v291, %v324
    %v341 = vadd.f32 %v292, %v325
    %v342 = vadd.f32 %v293, %v326
    %v343 = vadd.f32 %v294, %v327
    %v344 = vadd.f32 %v295, %v328
    %v345 = vadd.f32 %v296, %v329
    %v346 = vadd.f32 %v297, %v330
    %v347 = vadd.f32 %v298, %v331
    %v348 = vadd.f32 %v299, %v332
    %v349 = vadd.f32 %v300, %v333
    %v350 = vadd.f32 %v301, %v334
    %v351 = vadd.f32 %v302, %v335
    %s352 = scalar_lea.vmem [#allocation2], 24
    %v353 = vld [vmem:[%s352] sm:$0xf]
    %v354 = vld [vmem:[%s352 + $0x48] sm:$0xf]
    %v355 = vld [vmem:[%s352 + $0x90] sm:$0xf]
    %v356 = vld [vmem:[%s352 + $0xd8] sm:$0xf]
    %v357 = vld [vmem:[%s352 + $0x120] sm:$0xf]
    %v358 = vld [vmem:[%s352 + $0x168] sm:$0xf]
    %v359 = vld [vmem:[%s352 + $0x1b0] sm:$0xf]
    %v360 = vld [vmem:[%s352 + $0x1f8] sm:$0xf]
    %v361 = vld [vmem:[%s352 + $0x240] sm:$0xf]
    %v362 = vld [vmem:[%s352 + $0x288] sm:$0xf]
    %v363 = vld [vmem:[%s352 + $0x2d0] sm:$0xf]
    %v364 = vld [vmem:[%s352 + $0x318] sm:$0xf]
    %v365 = vld [vmem:[%s352 + $0x360] sm:$0xf]
    %v366 = vld [vmem:[%s352 + $0x3a8] sm:$0xf]
    %v367 = vld [vmem:[%s352 + $0x3f0] sm:$0xf]
    %v368 = vld [vmem:[%s352 + $0x438] sm:$0xf]
    %v369 = vunpack.c.l.bf16 %v353
    %v370 = vunpack.c.l.bf16 %v354
    %v371 = vunpack.c.l.bf16 %v355
    %v372 = vunpack.c.l.bf16 %v356
    %v373 = vunpack.c.l.bf16 %v357
    %v374 = vunpack.c.l.bf16 %v358
    %v375 = vunpack.c.l.bf16 %v359
    %v376 = vunpack.c.l.bf16 %v360
    %v377 = vunpack.c.l.bf16 %v361
    %v378 = vunpack.c.l.bf16 %v362
    %v379 = vunpack.c.l.bf16 %v363
    %v380 = vunpack.c.l.bf16 %v364
    %v381 = vunpack.c.l.bf16 %v365
    %v382 = vunpack.c.l.bf16 %v366
    %v383 = vunpack.c.l.bf16 %v367
    %v384 = vunpack.c.l.bf16 %v368
    %v385 = vadd.f32 %v336, %v369
    %v386 = vadd.f32 %v337, %v370
    %v387 = vadd.f32 %v338, %v371
    %v388 = vadd.f32 %v339, %v372
    %v389 = vadd.f32 %v340, %v373
    %v390 = vadd.f32 %v341, %v374
    %v391 = vadd.f32 %v342, %v375
    %v392 = vadd.f32 %v343, %v376
    %v393 = vadd.f32 %v344, %v377
    %v394 = vadd.f32 %v345, %v378
    %v395 = vadd.f32 %v346, %v379
    %v396 = vadd.f32 %v347, %v380
    %v397 = vadd.f32 %v348, %v381
    %v398 = vadd.f32 %v349, %v382
    %v399 = vadd.f32 %v350, %v383
    %v400 = vadd.f32 %v351, %v384
    %s401 = scalar_lea.vmem [#allocation2], 28
    %v402 = vld [vmem:[%s401] sm:$0xf]
    %v403 = vld [vmem:[%s401 + $0x48] sm:$0xf]
    %v404 = vld [vmem:[%s401 + $0x90] sm:$0xf]
    %v405 = vld [vmem:[%s401 + $0xd8] sm:$0xf]
    %v406 = vld [vmem:[%s401 + $0x120] sm:$0xf]
    %v407 = vld [vmem:[%s401 + $0x168] sm:$0xf]
    %v408 = vld [vmem:[%s401 + $0x1b0] sm:$0xf]
    %v409 = vld [vmem:[%s401 + $0x1f8] sm:$0xf]
    %v410 = vld [vmem:[%s401 + $0x240] sm:$0xf]
    %v411 = vld [vmem:[%s401 + $0x288] sm:$0xf]
    %v412 = vld [vmem:[%s401 + $0x2d0] sm:$0xf]
    %v413 = vld [vmem:[%s401 + $0x318] sm:$0xf]
    %v414 = vld [vmem:[%s401 + $0x360] sm:$0xf]
    %v415 = vld [vmem:[%s401 + $0x3a8] sm:$0xf]
    %v416 = vld [vmem:[%s401 + $0x3f0] sm:$0xf]
    %v417 = vld [vmem:[%s401 + $0x438] sm:$0xf]
    %v418 = vunpack.c.l.bf16 %v402
    %v419 = vunpack.c.l.bf16 %v403
    %v420 = vunpack.c.l.bf16 %v404
    %v421 = vunpack.c.l.bf16 %v405
    %v422 = vunpack.c.l.bf16 %v406
    %v423 = vunpack.c.l.bf16 %v407
    %v424 = vunpack.c.l.bf16 %v408
    %v425 = vunpack.c.l.bf16 %v409
    %v426 = vunpack.c.l.bf16 %v410
    %v427 = vunpack.c.l.bf16 %v411
    %v428 = vunpack.c.l.bf16 %v412
    %v429 = vunpack.c.l.bf16 %v413
    %v430 = vunpack.c.l.bf16 %v414
    %v431 = vunpack.c.l.bf16 %v415
    %v432 = vunpack.c.l.bf16 %v416
    %v433 = vunpack.c.l.bf16 %v417
    %v434 = vadd.f32 %v385, %v418
    %v435 = vadd.f32 %v386, %v419
    %v436 = vadd.f32 %v387, %v420
    %v437 = vadd.f32 %v388, %v421
    %v438 = vadd.f32 %v389, %v422
    %v439 = vadd.f32 %v390, %v423
    %v440 = vadd.f32 %v391, %v424
    %v441 = vadd.f32 %v392, %v425
    %v442 = vadd.f32 %v393, %v426
    %v443 = vadd.f32 %v394, %v427
    %v444 = vadd.f32 %v395, %v428
    %v445 = vadd.f32 %v396, %v429
    %v446 = vadd.f32 %v397, %v430
    %v447 = vadd.f32 %v398, %v431
    %v448 = vadd.f32 %v399, %v432
    %v449 = vadd.f32 %v400, %v433
    %s450 = scalar_lea.vmem [#allocation2], 32
    %v451 = vld [vmem:[%s450] sm:$0xf]
    %v452 = vld [vmem:[%s450 + $0x48] sm:$0xf]
    %v453 = vld [vmem:[%s450 + $0x90] sm:$0xf]
    %v454 = vld [vmem:[%s450 + $0xd8] sm:$0xf]
    %v455 = vld [vmem:[%s450 + $0x120] sm:$0xf]
    %v456 = vld [vmem:[%s450 + $0x168] sm:$0xf]
    %v457 = vld [vmem:[%s450 + $0x1b0] sm:$0xf]
    %v458 = vld [vmem:[%s450 + $0x1f8] sm:$0xf]
    %v459 = vld [vmem:[%s450 + $0x240] sm:$0xf]
    %v460 = vld [vmem:[%s450 + $0x288] sm:$0xf]
    %v461 = vld [vmem:[%s450 + $0x2d0] sm:$0xf]
    %v462 = vld [vmem:[%s450 + $0x318] sm:$0xf]
    %v463 = vld [vmem:[%s450 + $0x360] sm:$0xf]
    %v464 = vld [vmem:[%s450 + $0x3a8] sm:$0xf]
    %v465 = vld [vmem:[%s450 + $0x3f0] sm:$0xf]
    %v466 = vld [vmem:[%s450 + $0x438] sm:$0xf]
    %v467 = vunpack.c.l.bf16 %v451
    %v468 = vunpack.c.l.bf16 %v452
    %v469 = vunpack.c.l.bf16 %v453
    %v470 = vunpack.c.l.bf16 %v454
    %v471 = vunpack.c.l.bf16 %v455
    %v472 = vunpack.c.l.bf16 %v456
    %v473 = vunpack.c.l.bf16 %v457
    %v474 = vunpack.c.l.bf16 %v458
    %v475 = vunpack.c.l.bf16 %v459
    %v476 = vunpack.c.l.bf16 %v460
    %v477 = vunpack.c.l.bf16 %v461
    %v478 = vunpack.c.l.bf16 %v462
    %v479 = vunpack.c.l.bf16 %v463
    %v480 = vunpack.c.l.bf16 %v464
    %v481 = vunpack.c.l.bf16 %v465
    %v482 = vunpack.c.l.bf16 %v466
    %v483 = vadd.f32 %v434, %v467
    %v484 = vadd.f32 %v435, %v468
    %v485 = vadd.f32 %v436, %v469
    %v486 = vadd.f32 %v437, %v470
    %v487 = vadd.f32 %v438, %v471
    %v488 = vadd.f32 %v439, %v472
    %v489 = vadd.f32 %v440, %v473
    %v490 = vadd.f32 %v441, %v474
    %v491 = vadd.f32 %v442, %v475
    %v492 = vadd.f32 %v443, %v476
    %v493 = vadd.f32 %v444, %v477
    %v494 = vadd.f32 %v445, %v478
    %v495 = vadd.f32 %v446, %v479
    %v496 = vadd.f32 %v447, %v480
    %v497 = vadd.f32 %v448, %v481
    %v498 = vadd.f32 %v449, %v482
    %s499 = scalar_lea.vmem [#allocation2], 36
    %v500 = vld [vmem:[%s499] sm:$0xf]
    %v501 = vld [vmem:[%s499 + $0x48] sm:$0xf]
    %v502 = vld [vmem:[%s499 + $0x90] sm:$0xf]
    %v503 = vld [vmem:[%s499 + $0xd8] sm:$0xf]
    %v504 = vld [vmem:[%s499 + $0x120] sm:$0xf]
    %v505 = vld [vmem:[%s499 + $0x168] sm:$0xf]
    %v506 = vld [vmem:[%s499 + $0x1b0] sm:$0xf]
    %v507 = vld [vmem:[%s499 + $0x1f8] sm:$0xf]
    %v508 = vld [vmem:[%s499 + $0x240] sm:$0xf]
    %v509 = vld [vmem:[%s499 + $0x288] sm:$0xf]
    %v510 = vld [vmem:[%s499 + $0x2d0] sm:$0xf]
    %v511 = vld [vmem:[%s499 + $0x318] sm:$0xf]
    %v512 = vld [vmem:[%s499 + $0x360] sm:$0xf]
    %v513 = vld [vmem:[%s499 + $0x3a8] sm:$0xf]
    %v514 = vld [vmem:[%s499 + $0x3f0] sm:$0xf]
    %v515 = vld [vmem:[%s499 + $0x438] sm:$0xf]
    %v516 = vunpack.c.l.bf16 %v500
    %v517 = vunpack.c.l.bf16 %v501
    %v518 = vunpack.c.l.bf16 %v502
    %v519 = vunpack.c.l.bf16 %v503
    %v520 = vunpack.c.l.bf16 %v504
    %v521 = vunpack.c.l.bf16 %v505
    %v522 = vunpack.c.l.bf16 %v506
    %v523 = vunpack.c.l.bf16 %v507
    %v524 = vunpack.c.l.bf16 %v508
    %v525 = vunpack.c.l.bf16 %v509
    %v526 = vunpack.c.l.bf16 %v510
    %v527 = vunpack.c.l.bf16 %v511
    %v528 = vunpack.c.l.bf16 %v512
    %v529 = vunpack.c.l.bf16 %v513
    %v530 = vunpack.c.l.bf16 %v514
    %v531 = vunpack.c.l.bf16 %v515
    %v532 = vadd.f32 %v483, %v516
    %v533 = vadd.f32 %v484, %v517
    %v534 = vadd.f32 %v485, %v518
    %v535 = vadd.f32 %v486, %v519
    %v536 = vadd.f32 %v487, %v520
    %v537 = vadd.f32 %v488, %v521
    %v538 = vadd.f32 %v489, %v522
    %v539 = vadd.f32 %v490, %v523
    %v540 = vadd.f32 %v491, %v524
    %v541 = vadd.f32 %v492, %v525
    %v542 = vadd.f32 %v493, %v526
    %v543 = vadd.f32 %v494, %v527
    %v544 = vadd.f32 %v495, %v528
    %v545 = vadd.f32 %v496, %v529
    %v546 = vadd.f32 %v497, %v530
    %v547 = vadd.f32 %v498, %v531
    %s548 = scalar_lea.vmem [#allocation2], 40
    %v549 = vld [vmem:[%s548] sm:$0xf]
    %v550 = vld [vmem:[%s548 + $0x48] sm:$0xf]
    %v551 = vld [vmem:[%s548 + $0x90] sm:$0xf]
    %v552 = vld [vmem:[%s548 + $0xd8] sm:$0xf]
    %v553 = vld [vmem:[%s548 + $0x120] sm:$0xf]
    %v554 = vld [vmem:[%s548 + $0x168] sm:$0xf]
    %v555 = vld [vmem:[%s548 + $0x1b0] sm:$0xf]
    %v556 = vld [vmem:[%s548 + $0x1f8] sm:$0xf]
    %v557 = vld [vmem:[%s548 + $0x240] sm:$0xf]
    %v558 = vld [vmem:[%s548 + $0x288] sm:$0xf]
    %v559 = vld [vmem:[%s548 + $0x2d0] sm:$0xf]
    %v560 = vld [vmem:[%s548 + $0x318] sm:$0xf]
    %v561 = vld [vmem:[%s548 + $0x360] sm:$0xf]
    %v562 = vld [vmem:[%s548 + $0x3a8] sm:$0xf]
    %v563 = vld [vmem:[%s548 + $0x3f0] sm:$0xf]
    %v564 = vld [vmem:[%s548 + $0x438] sm:$0xf]
    %v565 = vunpack.c.l.bf16 %v549
    %v566 = vunpack.c.l.bf16 %v550
    %v567 = vunpack.c.l.bf16 %v551
    %v568 = vunpack.c.l.bf16 %v552
    %v569 = vunpack.c.l.bf16 %v553
    %v570 = vunpack.c.l.bf16 %v554
    %v571 = vunpack.c.l.bf16 %v555
    %v572 = vunpack.c.l.bf16 %v556
    %v573 = vunpack.c.l.bf16 %v557
    %v574 = vunpack.c.l.bf16 %v558
    %v575 = vunpack.c.l.bf16 %v559
    %v576 = vunpack.c.l.bf16 %v560
    %v577 = vunpack.c.l.bf16 %v561
    %v578 = vunpack.c.l.bf16 %v562
    %v579 = vunpack.c.l.bf16 %v563
    %v580 = vunpack.c.l.bf16 %v564
    %v581 = vadd.f32 %v532, %v565
    %v582 = vadd.f32 %v533, %v566
    %v583 = vadd.f32 %v534, %v567
    %v584 = vadd.f32 %v535, %v568
    %v585 = vadd.f32 %v536, %v569
    %v586 = vadd.f32 %v537, %v570
    %v587 = vadd.f32 %v538, %v571
    %v588 = vadd.f32 %v539, %v572
    %v589 = vadd.f32 %v540, %v573
    %v590 = vadd.f32 %v541, %v574
    %v591 = vadd.f32 %v542, %v575
    %v592 = vadd.f32 %v543, %v576
    %v593 = vadd.f32 %v544, %v577
    %v594 = vadd.f32 %v545, %v578
    %v595 = vadd.f32 %v546, %v579
    %v596 = vadd.f32 %v547, %v580
    %s597 = scalar_lea.vmem [#allocation2], 44
    %v598 = vld [vmem:[%s597] sm:$0xf]
    %v599 = vld [vmem:[%s597 + $0x48] sm:$0xf]
    %v600 = vld [vmem:[%s597 + $0x90] sm:$0xf]
    %v601 = vld [vmem:[%s597 + $0xd8] sm:$0xf]
    %v602 = vld [vmem:[%s597 + $0x120] sm:$0xf]
    %v603 = vld [vmem:[%s597 + $0x168] sm:$0xf]
    %v604 = vld [vmem:[%s597 + $0x1b0] sm:$0xf]
    %v605 = vld [vmem:[%s597 + $0x1f8] sm:$0xf]
    %v606 = vld [vmem:[%s597 + $0x240] sm:$0xf]
    %v607 = vld [vmem:[%s597 + $0x288] sm:$0xf]
    %v608 = vld [vmem:[%s597 + $0x2d0] sm:$0xf]
    %v609 = vld [vmem:[%s597 + $0x318] sm:$0xf]
    %v610 = vld [vmem:[%s597 + $0x360] sm:$0xf]
    %v611 = vld [vmem:[%s597 + $0x3a8] sm:$0xf]
    %v612 = vld [vmem:[%s597 + $0x3f0] sm:$0xf]
    %v613 = vld [vmem:[%s597 + $0x438] sm:$0xf]
    %v614 = vunpack.c.l.bf16 %v598
    %v615 = vunpack.c.l.bf16 %v599
    %v616 = vunpack.c.l.bf16 %v600
    %v617 = vunpack.c.l.bf16 %v601
    %v618 = vunpack.c.l.bf16 %v602
    %v619 = vunpack.c.l.bf16 %v603
    %v620 = vunpack.c.l.bf16 %v604
    %v621 = vunpack.c.l.bf16 %v605
    %v622 = vunpack.c.l.bf16 %v606
    %v623 = vunpack.c.l.bf16 %v607
    %v624 = vunpack.c.l.bf16 %v608
    %v625 = vunpack.c.l.bf16 %v609
    %v626 = vunpack.c.l.bf16 %v610
    %v627 = vunpack.c.l.bf16 %v611
    %v628 = vunpack.c.l.bf16 %v612
    %v629 = vunpack.c.l.bf16 %v613
    %v630 = vadd.f32 %v581, %v614
    %v631 = vadd.f32 %v582, %v615
    %v632 = vadd.f32 %v583, %v616
    %v633 = vadd.f32 %v584, %v617
    %v634 = vadd.f32 %v585, %v618
    %v635 = vadd.f32 %v586, %v619
    %v636 = vadd.f32 %v587, %v620
    %v637 = vadd.f32 %v588, %v621
    %v638 = vadd.f32 %v589, %v622
    %v639 = vadd.f32 %v590, %v623
    %v640 = vadd.f32 %v591, %v624
    %v641 = vadd.f32 %v592, %v625
    %v642 = vadd.f32 %v593, %v626
    %v643 = vadd.f32 %v594, %v627
    %v644 = vadd.f32 %v595, %v628
    %v645 = vadd.f32 %v596, %v629
    %s646 = scalar_lea.vmem [#allocation2], 48
    %v647 = vld [vmem:[%s646] sm:$0xf]
    %v648 = vld [vmem:[%s646 + $0x48] sm:$0xf]
    %v649 = vld [vmem:[%s646 + $0x90] sm:$0xf]
    %v650 = vld [vmem:[%s646 + $0xd8] sm:$0xf]
    %v651 = vld [vmem:[%s646 + $0x120] sm:$0xf]
    %v652 = vld [vmem:[%s646 + $0x168] sm:$0xf]
    %v653 = vld [vmem:[%s646 + $0x1b0] sm:$0xf]
    %v654 = vld [vmem:[%s646 + $0x1f8] sm:$0xf]
    %v655 = vld [vmem:[%s646 + $0x240] sm:$0xf]
    %v656 = vld [vmem:[%s646 + $0x288] sm:$0xf]
    %v657 = vld [vmem:[%s646 + $0x2d0] sm:$0xf]
    %v658 = vld [vmem:[%s646 + $0x318] sm:$0xf]
    %v659 = vld [vmem:[%s646 + $0x360] sm:$0xf]
    %v660 = vld [vmem:[%s646 + $0x3a8] sm:$0xf]
    %v661 = vld [vmem:[%s646 + $0x3f0] sm:$0xf]
    %v662 = vld [vmem:[%s646 + $0x438] sm:$0xf]
    %v663 = vunpack.c.l.bf16 %v647
    %v664 = vunpack.c.l.bf16 %v648
    %v665 = vunpack.c.l.bf16 %v649
    %v666 = vunpack.c.l.bf16 %v650
    %v667 = vunpack.c.l.bf16 %v651
    %v668 = vunpack.c.l.bf16 %v652
    %v669 = vunpack.c.l.bf16 %v653
    %v670 = vunpack.c.l.bf16 %v654
    %v671 = vunpack.c.l.bf16 %v655
    %v672 = vunpack.c.l.bf16 %v656
    %v673 = vunpack.c.l.bf16 %v657
    %v674 = vunpack.c.l.bf16 %v658
    %v675 = vunpack.c.l.bf16 %v659
    %v676 = vunpack.c.l.bf16 %v660
    %v677 = vunpack.c.l.bf16 %v661
    %v678 = vunpack.c.l.bf16 %v662
    %v679 = vadd.f32 %v630, %v663
    %v680 = vadd.f32 %v631, %v664
    %v681 = vadd.f32 %v632, %v665
    %v682 = vadd.f32 %v633, %v666
    %v683 = vadd.f32 %v634, %v667
    %v684 = vadd.f32 %v635, %v668
    %v685 = vadd.f32 %v636, %v669
    %v686 = vadd.f32 %v637, %v670
    %v687 = vadd.f32 %v638, %v671
    %v688 = vadd.f32 %v639, %v672
    %v689 = vadd.f32 %v640, %v673
    %v690 = vadd.f32 %v641, %v674
    %v691 = vadd.f32 %v642, %v675
    %v692 = vadd.f32 %v643, %v676
    %v693 = vadd.f32 %v644, %v677
    %v694 = vadd.f32 %v645, %v678
    %s695 = scalar_lea.vmem [#allocation2], 52
    %v696 = vld [vmem:[%s695] sm:$0xf]
    %v697 = vld [vmem:[%s695 + $0x48] sm:$0xf]
    %v698 = vld [vmem:[%s695 + $0x90] sm:$0xf]
    %v699 = vld [vmem:[%s695 + $0xd8] sm:$0xf]
    %v700 = vld [vmem:[%s695 + $0x120] sm:$0xf]
    %v701 = vld [vmem:[%s695 + $0x168] sm:$0xf]
    %v702 = vld [vmem:[%s695 + $0x1b0] sm:$0xf]
    %v703 = vld [vmem:[%s695 + $0x1f8] sm:$0xf]
    %v704 = vld [vmem:[%s695 + $0x240] sm:$0xf]
    %v705 = vld [vmem:[%s695 + $0x288] sm:$0xf]
    %v706 = vld [vmem:[%s695 + $0x2d0] sm:$0xf]
    %v707 = vld [vmem:[%s695 + $0x318] sm:$0xf]
    %v708 = vld [vmem:[%s695 + $0x360] sm:$0xf]
    %v709 = vld [vmem:[%s695 + $0x3a8] sm:$0xf]
    %v710 = vld [vmem:[%s695 + $0x3f0] sm:$0xf]
    %v711 = vld [vmem:[%s695 + $0x438] sm:$0xf]
    %v712 = vunpack.c.l.bf16 %v696
    %v713 = vunpack.c.l.bf16 %v697
    %v714 = vunpack.c.l.bf16 %v698
    %v715 = vunpack.c.l.bf16 %v699
    %v716 = vunpack.c.l.bf16 %v700
    %v717 = vunpack.c.l.bf16 %v701
    %v718 = vunpack.c.l.bf16 %v702
    %v719 = vunpack.c.l.bf16 %v703
    %v720 = vunpack.c.l.bf16 %v704
    %v721 = vunpack.c.l.bf16 %v705
    %v722 = vunpack.c.l.bf16 %v706
    %v723 = vunpack.c.l.bf16 %v707
    %v724 = vunpack.c.l.bf16 %v708
    %v725 = vunpack.c.l.bf16 %v709
    %v726 = vunpack.c.l.bf16 %v710
    %v727 = vunpack.c.l.bf16 %v711
    %v728 = vadd.f32 %v679, %v712
    %v729 = vadd.f32 %v680, %v713
    %v730 = vadd.f32 %v681, %v714
    %v731 = vadd.f32 %v682, %v715
    %v732 = vadd.f32 %v683, %v716
    %v733 = vadd.f32 %v684, %v717
    %v734 = vadd.f32 %v685, %v718
    %v735 = vadd.f32 %v686, %v719
    %v736 = vadd.f32 %v687, %v720
    %v737 = vadd.f32 %v688, %v721
    %v738 = vadd.f32 %v689, %v722
    %v739 = vadd.f32 %v690, %v723
    %v740 = vadd.f32 %v691, %v724
    %v741 = vadd.f32 %v692, %v725
    %v742 = vadd.f32 %v693, %v726
    %v743 = vadd.f32 %v694, %v727
    %s744 = scalar_lea.vmem [#allocation2], 56
    %v745 = vld [vmem:[%s744] sm:$0xf]
    %v746 = vld [vmem:[%s744 + $0x48] sm:$0xf]
    %v747 = vld [vmem:[%s744 + $0x90] sm:$0xf]
    %v748 = vld [vmem:[%s744 + $0xd8] sm:$0xf]
    %v749 = vld [vmem:[%s744 + $0x120] sm:$0xf]
    %v750 = vld [vmem:[%s744 + $0x168] sm:$0xf]
    %v751 = vld [vmem:[%s744 + $0x1b0] sm:$0xf]
    %v752 = vld [vmem:[%s744 + $0x1f8] sm:$0xf]
    %v753 = vld [vmem:[%s744 + $0x240] sm:$0xf]
    %v754 = vld [vmem:[%s744 + $0x288] sm:$0xf]
    %v755 = vld [vmem:[%s744 + $0x2d0] sm:$0xf]
    %v756 = vld [vmem:[%s744 + $0x318] sm:$0xf]
    %v757 = vld [vmem:[%s744 + $0x360] sm:$0xf]
    %v758 = vld [vmem:[%s744 + $0x3a8] sm:$0xf]
    %v759 = vld [vmem:[%s744 + $0x3f0] sm:$0xf]
    %v760 = vld [vmem:[%s744 + $0x438] sm:$0xf]
    %v761 = vunpack.c.l.bf16 %v745
    %v762 = vunpack.c.l.bf16 %v746
    %v763 = vunpack.c.l.bf16 %v747
    %v764 = vunpack.c.l.bf16 %v748
    %v765 = vunpack.c.l.bf16 %v749
    %v766 = vunpack.c.l.bf16 %v750
    %v767 = vunpack.c.l.bf16 %v751
    %v768 = vunpack.c.l.bf16 %v752
    %v769 = vunpack.c.l.bf16 %v753
    %v770 = vunpack.c.l.bf16 %v754
    %v771 = vunpack.c.l.bf16 %v755
    %v772 = vunpack.c.l.bf16 %v756
    %v773 = vunpack.c.l.bf16 %v757
    %v774 = vunpack.c.l.bf16 %v758
    %v775 = vunpack.c.l.bf16 %v759
    %v776 = vunpack.c.l.bf16 %v760
    %v777 = vadd.f32 %v728, %v761
    %v778 = vadd.f32 %v729, %v762
    %v779 = vadd.f32 %v730, %v763
    %v780 = vadd.f32 %v731, %v764
    %v781 = vadd.f32 %v732, %v765
    %v782 = vadd.f32 %v733, %v766
    %v783 = vadd.f32 %v734, %v767
    %v784 = vadd.f32 %v735, %v768
    %v785 = vadd.f32 %v736, %v769
    %v786 = vadd.f32 %v737, %v770
    %v787 = vadd.f32 %v738, %v771
    %v788 = vadd.f32 %v739, %v772
    %v789 = vadd.f32 %v740, %v773
    %v790 = vadd.f32 %v741, %v774
    %v791 = vadd.f32 %v742, %v775
    %v792 = vadd.f32 %v743, %v776
    %s793 = scalar_lea.vmem [#allocation2], 60
    %v794 = vld [vmem:[%s793] sm:$0xf]
    %v795 = vld [vmem:[%s793 + $0x48] sm:$0xf]
    %v796 = vld [vmem:[%s793 + $0x90] sm:$0xf]
    %v797 = vld [vmem:[%s793 + $0xd8] sm:$0xf]
    %v798 = vld [vmem:[%s793 + $0x120] sm:$0xf]
    %v799 = vld [vmem:[%s793 + $0x168] sm:$0xf]
    %v800 = vld [vmem:[%s793 + $0x1b0] sm:$0xf]
    %v801 = vld [vmem:[%s793 + $0x1f8] sm:$0xf]
    %v802 = vld [vmem:[%s793 + $0x240] sm:$0xf]
    %v803 = vld [vmem:[%s793 + $0x288] sm:$0xf]
    %v804 = vld [vmem:[%s793 + $0x2d0] sm:$0xf]
    %v805 = vld [vmem:[%s793 + $0x318] sm:$0xf]
    %v806 = vld [vmem:[%s793 + $0x360] sm:$0xf]
    %v807 = vld [vmem:[%s793 + $0x3a8] sm:$0xf]
    %v808 = vld [vmem:[%s793 + $0x3f0] sm:$0xf]
    %v809 = vld [vmem:[%s793 + $0x438] sm:$0xf]
    %v810 = vunpack.c.l.bf16 %v794
    %v811 = vunpack.c.l.bf16 %v795
    %v812 = vunpack.c.l.bf16 %v796
    %v813 = vunpack.c.l.bf16 %v797
    %v814 = vunpack.c.l.bf16 %v798
    %v815 = vunpack.c.l.bf16 %v799
    %v816 = vunpack.c.l.bf16 %v800
    %v817 = vunpack.c.l.bf16 %v801
    %v818 = vunpack.c.l.bf16 %v802
    %v819 = vunpack.c.l.bf16 %v803
    %v820 = vunpack.c.l.bf16 %v804
    %v821 = vunpack.c.l.bf16 %v805
    %v822 = vunpack.c.l.bf16 %v806
    %v823 = vunpack.c.l.bf16 %v807
    %v824 = vunpack.c.l.bf16 %v808
    %v825 = vunpack.c.l.bf16 %v809
    %v826 = vadd.f32 %v777, %v810
    %v827 = vadd.f32 %v778, %v811
    %v828 = vadd.f32 %v779, %v812
    %v829 = vadd.f32 %v780, %v813
    %v830 = vadd.f32 %v781, %v814
    %v831 = vadd.f32 %v782, %v815
    %v832 = vadd.f32 %v783, %v816
    %v833 = vadd.f32 %v784, %v817
    %v834 = vadd.f32 %v785, %v818
    %v835 = vadd.f32 %v786, %v819
    %v836 = vadd.f32 %v787, %v820
    %v837 = vadd.f32 %v788, %v821
    %v838 = vadd.f32 %v789, %v822
    %v839 = vadd.f32 %v790, %v823
    %v840 = vadd.f32 %v791, %v824
    %v841 = vadd.f32 %v792, %v825
    %s842 = scalar_lea.vmem [#allocation2], 64
    %v843 = vld [vmem:[%s842] sm:$0xf]
    %v844 = vld [vmem:[%s842 + $0x48] sm:$0xf]
    %v845 = vld [vmem:[%s842 + $0x90] sm:$0xf]
    %v846 = vld [vmem:[%s842 + $0xd8] sm:$0xf]
    %v847 = vld [vmem:[%s842 + $0x120] sm:$0xf]
    %v848 = vld [vmem:[%s842 + $0x168] sm:$0xf]
    %v849 = vld [vmem:[%s842 + $0x1b0] sm:$0xf]
    %v850 = vld [vmem:[%s842 + $0x1f8] sm:$0xf]
    %v851 = vld [vmem:[%s842 + $0x240] sm:$0xf]
    %v852 = vld [vmem:[%s842 + $0x288] sm:$0xf]
    %v853 = vld [vmem:[%s842 + $0x2d0] sm:$0xf]
    %v854 = vld [vmem:[%s842 + $0x318] sm:$0xf]
    %v855 = vld [vmem:[%s842 + $0x360] sm:$0xf]
    %v856 = vld [vmem:[%s842 + $0x3a8] sm:$0xf]
    %v857 = vld [vmem:[%s842 + $0x3f0] sm:$0xf]
    %v858 = vld [vmem:[%s842 + $0x438] sm:$0xf]
    %v859 = vunpack.c.l.bf16 %v843
    %v860 = vunpack.c.l.bf16 %v844
    %v861 = vunpack.c.l.bf16 %v845
    %v862 = vunpack.c.l.bf16 %v846
    %v863 = vunpack.c.l.bf16 %v847
    %v864 = vunpack.c.l.bf16 %v848
    %v865 = vunpack.c.l.bf16 %v849
    %v866 = vunpack.c.l.bf16 %v850
    %v867 = vunpack.c.l.bf16 %v851
    %v868 = vunpack.c.l.bf16 %v852
    %v869 = vunpack.c.l.bf16 %v853
    %v870 = vunpack.c.l.bf16 %v854
    %v871 = vunpack.c.l.bf16 %v855
    %v872 = vunpack.c.l.bf16 %v856
    %v873 = vunpack.c.l.bf16 %v857
    %v874 = vunpack.c.l.bf16 %v858
    %v875 = vadd.f32 %v826, %v859
    %v876 = vadd.f32 %v827, %v860
    %v877 = vadd.f32 %v828, %v861
    %v878 = vadd.f32 %v829, %v862
    %v879 = vadd.f32 %v830, %v863
    %v880 = vadd.f32 %v831, %v864
    %v881 = vadd.f32 %v832, %v865
    %v882 = vadd.f32 %v833, %v866
    %v883 = vadd.f32 %v834, %v867
    %v884 = vadd.f32 %v835, %v868
    %v885 = vadd.f32 %v836, %v869
    %v886 = vadd.f32 %v837, %v870
    %v887 = vadd.f32 %v838, %v871
    %v888 = vadd.f32 %v839, %v872
    %v889 = vadd.f32 %v840, %v873
    %v890 = vadd.f32 %v841, %v874
    %891 = vadd.xlane.f32.xlu0 %v875
    %v892 = vpop.xlane.xlu0 %891
    %893 = vadd.xlane.f32.xlu0 %v876
    %v894 = vpop.xlane.xlu0 %893
    %895 = vadd.xlane.f32.xlu0 %v877
    %v896 = vpop.xlane.xlu0 %895
    %897 = vadd.xlane.f32.xlu0 %v878
    %v898 = vpop.xlane.xlu0 %897
    %899 = vadd.xlane.f32.xlu0 %v879
    %v900 = vpop.xlane.xlu0 %899
    %901 = vadd.xlane.f32.xlu0 %v880
    %v902 = vpop.xlane.xlu0 %901
    %903 = vadd.xlane.f32.xlu0 %v881
    %v904 = vpop.xlane.xlu0 %903
    %905 = vadd.xlane.f32.xlu0 %v882
    %v906 = vpop.xlane.xlu0 %905
    %907 = vadd.xlane.f32.xlu0 %v883
    %v908 = vpop.xlane.xlu0 %907
    %909 = vadd.xlane.f32.xlu0 %v884
    %v910 = vpop.xlane.xlu0 %909
    %911 = vadd.xlane.f32.xlu0 %v885
    %v912 = vpop.xlane.xlu0 %911
    %913 = vadd.xlane.f32.xlu0 %v886
    %v914 = vpop.xlane.xlu0 %913
    %915 = vadd.xlane.f32.xlu0 %v887
    %v916 = vpop.xlane.xlu0 %915
    %917 = vadd.xlane.f32.xlu0 %v888
    %v918 = vpop.xlane.xlu0 %917
    %919 = vadd.xlane.f32.xlu0 %v889
    %v920 = vpop.xlane.xlu0 %919
    %921 = vadd.xlane.f32.xlu0 %v890
    %v922 = vpop.xlane.xlu0 %921
    %v923 = vld [vmem:[#allocation2 + $0x44] sm:$0xf]
    %v924 = vld [vmem:[#allocation2 + $0x8c] sm:$0xf]
    %v925 = vld [vmem:[#allocation2 + $0xd4] sm:$0xf]
    %v926 = vld [vmem:[#allocation2 + $0x11c] sm:$0xf]
    %v927 = vld [vmem:[#allocation2 + $0x164] sm:$0xf]
    %v928 = vld [vmem:[#allocation2 + $0x1ac] sm:$0xf]
    %v929 = vld [vmem:[#allocation2 + $0x1f4] sm:$0xf]
    %v930 = vld [vmem:[#allocation2 + $0x23c] sm:$0xf]
    %v931 = vld [vmem:[#allocation2 + $0x284] sm:$0xf]
    %v932 = vld [vmem:[#allocation2 + $0x2cc] sm:$0xf]
    %v933 = vld [vmem:[#allocation2 + $0x314] sm:$0xf]
    %v934 = vld [vmem:[#allocation2 + $0x35c] sm:$0xf]
    %v935 = vld [vmem:[#allocation2 + $0x3a4] sm:$0xf]
    %v936 = vld [vmem:[#allocation2 + $0x3ec] sm:$0xf]
    %v937 = vld [vmem:[#allocation2 + $0x434] sm:$0xf]
    %v938 = vld [vmem:[#allocation2 + $0x47c] sm:$0xf]
    %v939 = vunpack.c.l.bf16 %v923
    %v940 = vunpack.c.l.bf16 %v924
    %v941 = vunpack.c.l.bf16 %v925
    %v942 = vunpack.c.l.bf16 %v926
    %v943 = vunpack.c.l.bf16 %v927
    %v944 = vunpack.c.l.bf16 %v928
    %v945 = vunpack.c.l.bf16 %v929
    %v946 = vunpack.c.l.bf16 %v930
    %v947 = vunpack.c.l.bf16 %v931
    %v948 = vunpack.c.l.bf16 %v932
    %v949 = vunpack.c.l.bf16 %v933
    %v950 = vunpack.c.l.bf16 %v934
    %v951 = vunpack.c.l.bf16 %v935
    %v952 = vunpack.c.l.bf16 %v936
    %v953 = vunpack.c.l.bf16 %v937
    %v954 = vunpack.c.l.bf16 %v938
    %vm955 = vcmask 605184
    %v956 = vsel %vm955, %v939, 0.0
    %957 = vadd.xlane.f32.xlu0 %v956
    %v958 = vpop.xlane.xlu0 %957
    %v959 = vsel %vm955, %v940, 0.0
    %960 = vadd.xlane.f32.xlu0 %v959
    %v961 = vpop.xlane.xlu0 %960
    %v962 = vsel %vm955, %v941, 0.0
    %963 = vadd.xlane.f32.xlu0 %v962
    %v964 = vpop.xlane.xlu0 %963
    %v965 = vsel %vm955, %v942, 0.0
    %966 = vadd.xlane.f32.xlu0 %v965
    %v967 = vpop.xlane.xlu0 %966
    %v968 = vsel %vm955, %v943, 0.0
    %969 = vadd.xlane.f32.xlu0 %v968
    %v970 = vpop.xlane.xlu0 %969
    %v971 = vsel %vm955, %v944, 0.0
    %972 = vadd.xlane.f32.xlu0 %v971
    %v973 = vpop.xlane.xlu0 %972
    %v974 = vsel %vm955, %v945, 0.0
    %975 = vadd.xlane.f32.xlu0 %v974
    %v976 = vpop.xlane.xlu0 %975
    %v977 = vsel %vm955, %v946, 0.0
    %978 = vadd.xlane.f32.xlu0 %v977
    %v979 = vpop.xlane.xlu0 %978
    %v980 = vsel %vm955, %v947, 0.0
    %981 = vadd.xlane.f32.xlu0 %v980
    %v982 = vpop.xlane.xlu0 %981
    %v983 = vsel %vm955, %v948, 0.0
    %984 = vadd.xlane.f32.xlu0 %v983
    %v985 = vpop.xlane.xlu0 %984
    %v986 = vsel %vm955, %v949, 0.0
    %987 = vadd.xlane.f32.xlu0 %v986
    %v988 = vpop.xlane.xlu0 %987
    %v989 = vsel %vm955, %v950, 0.0
    %990 = vadd.xlane.f32.xlu0 %v989
    %v991 = vpop.xlane.xlu0 %990
    %v992 = vsel %vm955, %v951, 0.0
    %993 = vadd.xlane.f32.xlu0 %v992
    %v994 = vpop.xlane.xlu0 %993
    %v995 = vsel %vm955, %v952, 0.0
    %996 = vadd.xlane.f32.xlu0 %v995
    %v997 = vpop.xlane.xlu0 %996
    %v998 = vsel %vm955, %v953, 0.0
    %999 = vadd.xlane.f32.xlu0 %v998
    %v1000 = vpop.xlane.xlu0 %999
    %v1001 = vsel %vm955, %v954, 0.0
    %1002 = vadd.xlane.f32.xlu0 %v1001
    %v1003 = vpop.xlane.xlu0 %1002
    %v1004 = vadd.f32 %v892, %v958
    %v1005 = vadd.f32 %v894, %v961
    %v1006 = vadd.f32 %v896, %v964
    %v1007 = vadd.f32 %v898, %v967
    %v1008 = vadd.f32 %v900, %v970
    %v1009 = vadd.f32 %v902, %v973
    %v1010 = vadd.f32 %v904, %v976
    %v1011 = vadd.f32 %v906, %v979
    %v1012 = vadd.f32 %v908, %v982
    %v1013 = vadd.f32 %v910, %v985
    %v1014 = vadd.f32 %v912, %v988
    %v1015 = vadd.f32 %v914, %v991
    %v1016 = vadd.f32 %v916, %v994
    %v1017 = vadd.f32 %v918, %v997
    %v1018 = vadd.f32 %v920, %v1000
    %v1019 = vadd.f32 %v922, %v1003
    %v1020 = vmul.f32 %v1004, 0.00044444445
    %v1021 = vmul.f32 %v1005, 0.00044444445
    %v1022 = vmul.f32 %v1006, 0.00044444445
    %v1023 = vmul.f32 %v1007, 0.00044444445
    %v1024 = vmul.f32 %v1008, 0.00044444445
    %v1025 = vmul.f32 %v1009, 0.00044444445
    %v1026 = vmul.f32 %v1010, 0.00044444445
    %v1027 = vmul.f32 %v1011, 0.00044444445
    %v1028 = vmul.f32 %v1012, 0.00044444445
    %v1029 = vmul.f32 %v1013, 0.00044444445
    %v1030 = vmul.f32 %v1014, 0.00044444445
    %v1031 = vmul.f32 %v1015, 0.00044444445
    %v1032 = vmul.f32 %v1016, 0.00044444445
    %v1033 = vmul.f32 %v1017, 0.00044444445
    %v1034 = vmul.f32 %v1018, 0.00044444445
    %v1035 = vmul.f32 %v1019, 0.00044444445
    %v1036 = vld [vmem:[#allocation5] sm:$0xff]
    %v1037 = vld [vmem:[#allocation5 + $0x8] sm:$0xff]
    %v1038 = vld [vmem:[#allocation5 + $0x10] sm:$0xff]
    %v1039 = vld [vmem:[#allocation5 + $0x18] sm:$0xff]
    %v1040 = vld [vmem:[#allocation5 + $0x20] sm:$0xff]
    %v1041 = vld [vmem:[#allocation5 + $0x28] sm:$0xff]
    %v1042 = vld [vmem:[#allocation5 + $0x30] sm:$0xff]
    %v1043 = vld [vmem:[#allocation5 + $0x38] sm:$0xff]
    %v1044 = vld [vmem:[%s2] sm:$0x1]
    %v1046 = vlaneseq
    %v1047 = vshrl.u32 %v1046, 7
    %v1048 = vsub.s32 0, %v1047
    %v1049 = vrot.slane %v1044, %v1048
    %v1067 = vlaneseq
    %v1068 = vand.u32 %v1067, 127
    %v1069 = vlaneseq
    %v1070 = vshrl.u32 %v1069, 7
    %v1071 = vsub.s32 %v1068, %v1070
    %v1072 = vrot.slane %v1020, %v1071
    %v1073 = vadd.s32 %v1068, 4294967288
    %v1074 = vlaneseq
    %v1075 = vshrl.u32 %v1074, 7
    %v1076 = vsub.s32 %v1073, %v1075
    %v1077 = vrot.slane %v1021, %v1076
    %vm1078 = vcmask 130112
    %v1079 = vsel %vm1078, %v1077, %v1072
    %v1080 = vadd.s32 %v1068, 4294967280
    %v1081 = vlaneseq
    %v1082 = vshrl.u32 %v1081, 7
    %v1083 = vsub.s32 %v1080, %v1082
    %v1084 = vrot.slane %v1022, %v1083
    %vm1085 = vcmask 195712
    %v1086 = vsel %vm1085, %v1084, %v1079
    %v1087 = vadd.s32 %v1068, 4294967272
    %v1088 = vlaneseq
    %v1089 = vshrl.u32 %v1088, 7
    %v1090 = vsub.s32 %v1087, %v1089
    %v1091 = vrot.slane %v1023, %v1090
    %vm1092 = vcmask 261312
    %v1093 = vsel %vm1092, %v1091, %v1086
    %v1094 = vadd.s32 %v1068, 4294967264
    %v1095 = vlaneseq
    %v1096 = vshrl.u32 %v1095, 7
    %v1097 = vsub.s32 %v1094, %v1096
    %v1098 = vrot.slane %v1024, %v1097
    %vm1099 = vcmask 326912
    %v1100 = vsel %vm1099, %v1098, %v1093
    %v1101 = vadd.s32 %v1068, 4294967256
    %v1102 = vlaneseq
    %v1103 = vshrl.u32 %v1102, 7
    %v1104 = vsub.s32 %v1101, %v1103
    %v1105 = vrot.slane %v1025, %v1104
    %vm1106 = vcmask 392512
    %v1107 = vsel %vm1106, %v1105, %v1100
    %v1108 = vadd.s32 %v1068, 4294967248
    %v1109 = vlaneseq
    %v1110 = vshrl.u32 %v1109, 7
    %v1111 = vsub.s32 %v1108, %v1110
    %v1112 = vrot.slane %v1026, %v1111
    %vm1113 = vcmask 458112
    %v1114 = vsel %vm1113, %v1112, %v1107
    %v1115 = vadd.s32 %v1068, 4294967240
    %v1116 = vlaneseq
    %v1117 = vshrl.u32 %v1116, 7
    %v1118 = vsub.s32 %v1115, %v1117
    %v1119 = vrot.slane %v1027, %v1118
    %vm1120 = vcmask 523712
    %v1121 = vsel %vm1120, %v1119, %v1114
    %v1122 = vlaneseq
    %v1123 = vshrl.u32 %v1122, 7
    %v1124 = vsub.s32 %v1068, %v1123
    %v1125 = vrot.slane %v1028, %v1124
    %v1126 = vlaneseq
    %v1127 = vshrl.u32 %v1126, 7
    %v1128 = vsub.s32 %v1073, %v1127
    %v1129 = vrot.slane %v1029, %v1128
    %v1130 = vsel %vm1078, %v1129, %v1125
    %v1131 = vlaneseq
    %v1132 = vshrl.u32 %v1131, 7
    %v1133 = vsub.s32 %v1080, %v1132
    %v1134 = vrot.slane %v1030, %v1133
    %v1135 = vsel %vm1085, %v1134, %v1130
    %v1136 = vlaneseq
    %v1137 = vshrl.u32 %v1136, 7
    %v1138 = vsub.s32 %v1087, %v1137
    %v1139 = vrot.slane %v1031, %v1138
    %v1140 = vsel %vm1092, %v1139, %v1135
    %v1141 = vlaneseq
    %v1142 = vshrl.u32 %v1141, 7
    %v1143 = vsub.s32 %v1094, %v1142
    %v1144 = vrot.slane %v1032, %v1143
    %v1145 = vsel %vm1099, %v1144, %v1140
    %v1146 = vlaneseq
    %v1147 = vshrl.u32 %v1146, 7
    %v1148 = vsub.s32 %v1101, %v1147
    %v1149 = vrot.slane %v1033, %v1148
    %v1150 = vsel %vm1106, %v1149, %v1145
    %v1151 = vlaneseq
    %v1152 = vshrl.u32 %v1151, 7
    %v1153 = vsub.s32 %v1108, %v1152
    %v1154 = vrot.slane %v1034, %v1153
    %v1155 = vsel %vm1113, %v1154, %v1150
    %v1156 = vlaneseq
    %v1157 = vshrl.u32 %v1156, 7
    %v1158 = vsub.s32 %v1115, %v1157
    %v1159 = vrot.slane %v1035, %v1158
    %v1160 = vsel %vm1120, %v1159, %v1155
    %vm1161 = vcmask 1041409
    %v1162 = vsel %vm1161, %v1160, %v1121
    %vm1163 = vcmask 523264
    %v1164 = vsel %vm1163, %v1162, 0
    %1166 = vmatprep.subr.mxu0 0.0
    %1167 = vmatpush1.msra.mxu0 %v1036
    %1168 = vmatprep.subr.mxu0 0.0
    %1169 = vmatpush1.msra.mxu0 %v1037
    %1170 = vmatprep.subr.mxu0 0.0
    %1171 = vmatpush1.msra.mxu0 %v1038
    %1172 = vmatprep.subr.mxu0 0.0
    %1173 = vmatpush1.msra.mxu0 %v1039
    %1174 = vmatprep.subr.mxu0 0.0
    %1175 = vmatpush1.msra.mxu0 %v1040
    %1176 = vmatprep.subr.mxu0 0.0
    %1177 = vmatpush1.msra.mxu0 %v1041
    %1178 = vmatprep.subr.mxu0 0.0
    %1179 = vmatpush1.msra.mxu0 %v1042
    %1180 = vmatprep.subr.mxu0 0.0
    %1181 = vmatpush1.msra.mxu0 %v1043
    %1182 = vmatprep.subr.mxu0 0.0
    %1183 = vmatpush1.msra.mxu0 0.0
    %1184 = vmatprep.subr.mxu0 0.0
    %1185 = vmatpush1.msra.mxu0 0.0
    %1186 = vmatprep.subr.mxu0 0.0
    %1187 = vmatpush1.msra.mxu0 0.0
    %1188 = vmatprep.subr.mxu0 0.0
    %1189 = vmatpush1.msra.mxu0 0.0
    %1190 = vmatprep.subr.mxu0 0.0
    %1191 = vmatpush1.msra.mxu0 0.0
    %1192 = vmatprep.subr.mxu0 0.0
    %1193 = vmatpush1.msra.mxu0 0.0
    %1194 = vmatprep.subr.mxu0 0.0
    %1195 = vmatpush1.msra.mxu0 0.0
    %1196 = vmatprep.subr.mxu0 0.0
    %1197 = vmatpush1.msra.mxu0 0.0
    %1198 = vmatprep.subr.mxu0 0.0
    %1199 = vmatpush1.msra.mxu0 0.0
    %1200 = vmatprep.subr.mxu0 0.0
    %1201 = vmatpush1.msra.mxu0 0.0
    %1202 = vmatprep.subr.mxu0 0.0
    %1203 = vmatpush1.msra.mxu0 0.0
    %1204 = vmatprep.subr.mxu0 0.0
    %1205 = vmatpush1.msra.mxu0 0.0
    %1206 = vmatprep.subr.mxu0 0.0
    %1207 = vmatpush1.msra.mxu0 0.0
    %1208 = vmatprep.subr.mxu0 0.0
    %1209 = vmatpush1.msra.mxu0 0.0
    %1210 = vmatprep.subr.mxu0 0.0
    %1211 = vmatpush1.msra.mxu0 0.0
    %1212 = vmatprep.subr.mxu0 0.0
    %1213 = vmatpush1.msra.mxu0 0.0
    %1214 = vmatprep.subr.mxu0 0.0
    %1215 = vmatpush1.msra.mxu0 0.0
    %1216 = vmatprep.subr.mxu0 0.0
    %1217 = vmatpush1.msra.mxu0 0.0
    %1218 = vmatprep.subr.mxu0 0.0
    %1219 = vmatpush1.msra.mxu0 0.0
    %1220 = vmatprep.subr.mxu0 0.0
    %1221 = vmatpush1.msra.mxu0 0.0
    %1222 = vmatprep.subr.mxu0 0.0
    %1223 = vmatpush1.msra.mxu0 0.0
    %1224 = vmatprep.subr.mxu0 0.0
    %1225 = vmatpush1.msra.mxu0 0.0
    %1226 = vmatprep.subr.mxu0 0.0
    %1227 = vmatpush1.msra.mxu0 0.0
    %1228 = vmatprep.subr.mxu0 0.0
    %1229 = vmatpush1.msra.mxu0 0.0
    %1230 = vmatprep.mubr.f32.mxu0 0.0
    %1231 = vmatmul.mubr.f32.gmra.mrb[0].mxu0 %v1164
    %v1232 = vpop.f32.mrb[0].mxu0
    %v1233 = vadd.f32 %v1049, %v1232
    %v1234 = vpop.f32.mrb[0].mxu0
    %1235 = vdwg.mxu0
    %vm1236 = vcmask 517120
    %v1237 = vsel %vm1236, %v1233, 0.0
    %1238 = vadd.xlane.f32.xlu0 %v1237
    %v1239 = vpop.xlane.xlu0 %1238
    %v1240 = vrcp.pop 64.0
    %v1241 = vmul.f32 %v1239, %v1240
    %v1242 = vsub.f32 %v1233, %v1241
    %v1243 = vmul.f32 %v1242, %v1242
    %v1244 = vsel %vm1236, %v1243, 0.0
    %1245 = vadd.xlane.f32.xlu0 %v1244
    %v1246 = vpop.xlane.xlu0 %1245
    %v1247 = vmul.f32 %v1246, %v1240
    %v1248 = vadd.f32 %v1247, 1e-05
    %v1249 = vrsqrt.pop %v1248
    %v1250 = vmul.f32 %v1242, %v1249
    %v1251 = vmax.f32 %v1250, 0.0
    %v1252 = vld [vmem:[#allocation7] sm:$0xff]
    %v1253 = vld [vmem:[#allocation7 + $0x8] sm:$0xff]
    %v1254 = vld [vmem:[#allocation7 + $0x10] sm:$0xff]
    %v1255 = vld [vmem:[#allocation7 + $0x18] sm:$0xff]
    %v1256 = vld [vmem:[#allocation7 + $0x20] sm:$0xff]
    %v1257 = vld [vmem:[#allocation7 + $0x28] sm:$0xff]
    %v1258 = vld [vmem:[#allocation7 + $0x30] sm:$0xff]
    %v1259 = vld [vmem:[#allocation7 + $0x38] sm:$0xff]
    %v1261 = vsel %vm1163, %v1251, 0
    %1263 = vmatprep.subr.mxu0 0.0
    %1264 = vmatpush1.msra.mxu0 %v1252
    %1265 = vmatprep.subr.mxu0 0.0
    %1266 = vmatpush1.msra.mxu0 %v1253
    %1267 = vmatprep.subr.mxu0 0.0
    %1268 = vmatpush1.msra.mxu0 %v1254
    %1269 = vmatprep.subr.mxu0 0.0
    %1270 = vmatpush1.msra.mxu0 %v1255
    %1271 = vmatprep.subr.mxu0 0.0
    %1272 = vmatpush1.msra.mxu0 %v1256
    %1273 = vmatprep.subr.mxu0 0.0
    %1274 = vmatpush1.msra.mxu0 %v1257
    %1275 = vmatprep.subr.mxu0 0.0
    %1276 = vmatpush1.msra.mxu0 %v1258
    %1277 = vmatprep.subr.mxu0 0.0
    %1278 = vmatpush1.msra.mxu0 %v1259
    %1279 = vmatprep.subr.mxu0 0.0
    %1280 = vmatpush1.msra.mxu0 0.0
    %1281 = vmatprep.subr.mxu0 0.0
    %1282 = vmatpush1.msra.mxu0 0.0
    %1283 = vmatprep.subr.mxu0 0.0
    %1284 = vmatpush1.msra.mxu0 0.0
    %1285 = vmatprep.subr.mxu0 0.0
    %1286 = vmatpush1.msra.mxu0 0.0
    %1287 = vmatprep.subr.mxu0 0.0
    %1288 = vmatpush1.msra.mxu0 0.0
    %1289 = vmatprep.subr.mxu0 0.0
    %1290 = vmatpush1.msra.mxu0 0.0
    %1291 = vmatprep.subr.mxu0 0.0
    %1292 = vmatpush1.msra.mxu0 0.0
    %1293 = vmatprep.subr.mxu0 0.0
    %1294 = vmatpush1.msra.mxu0 0.0
    %1295 = vmatprep.subr.mxu0 0.0
    %1296 = vmatpush1.msra.mxu0 0.0
    %1297 = vmatprep.subr.mxu0 0.0
    %1298 = vmatpush1.msra.mxu0 0.0
    %1299 = vmatprep.subr.mxu0 0.0
    %1300 = vmatpush1.msra.mxu0 0.0
    %1301 = vmatprep.subr.mxu0 0.0
    %1302 = vmatpush1.msra.mxu0 0.0
    %1303 = vmatprep.subr.mxu0 0.0
    %1304 = vmatpush1.msra.mxu0 0.0
    %1305 = vmatprep.subr.mxu0 0.0
    %1306 = vmatpush1.msra.mxu0 0.0
    %1307 = vmatprep.subr.mxu0 0.0
    %1308 = vmatpush1.msra.mxu0 0.0
    %1309 = vmatprep.subr.mxu0 0.0
    %1310 = vmatpush1.msra.mxu0 0.0
    %1311 = vmatprep.subr.mxu0 0.0
    %1312 = vmatpush1.msra.mxu0 0.0
    %1313 = vmatprep.subr.mxu0 0.0
    %1314 = vmatpush1.msra.mxu0 0.0
    %1315 = vmatprep.subr.mxu0 0.0
    %1316 = vmatpush1.msra.mxu0 0.0
    %1317 = vmatprep.subr.mxu0 0.0
    %1318 = vmatpush1.msra.mxu0 0.0
    %1319 = vmatprep.subr.mxu0 0.0
    %1320 = vmatpush1.msra.mxu0 0.0
    %1321 = vmatprep.subr.mxu0 0.0
    %1322 = vmatpush1.msra.mxu0 0.0
    %1323 = vmatprep.subr.mxu0 0.0
    %1324 = vmatpush1.msra.mxu0 0.0
    %1325 = vmatprep.subr.mxu0 0.0
    %1326 = vmatpush1.msra.mxu0 0.0
    %1327 = vmatprep.mubr.f32.mxu0 0.0
    %1328 = vmatmul.mubr.f32.gmra.mrb[0].mxu0 %v1261
    %v1329 = vpop.f32.mrb[0].mxu0
    %v1330 = vadd.f32 0.0, %v1329
    %v1331 = vpop.f32.mrb[0].mxu0
    %1332 = vdwg.mxu0
    %1333 = vst.msk [vmem:[#allocation8] sm:$0x3] %vm1236, %v1330
    // Predicated region
    $region30: #{tpu_custom_call.1} parent=1 // pred_check
      _
    $region31: #{tpu_custom_call.1} parent=1 // pred_check_branch
      %1335 = sbr.rel (0) target = $region33
    $region32: #{tpu_custom_call.1} parent=1 // pred_region
      %s1337 = ssub.s32 32, 32
      %1338 = vsyncadd [#allocation4], %s1337
      %s1340 = sshll.u32 [#allocation8], 4
      %s1341 = int_to_ptr.vmem [resolvable:$true] %s1340
      %1343 = dma.vmem_to_hbm [thread:$0]  %s1341, 32, %s4, [#allocation4]
    $region33: #{tpu_custom_call.1} parent=1 // pred_fallthru
      _
    // Predicated region
    $region34: #{tpu_custom_call.1} parent=1 // pred_check
      _
    $region35: #{tpu_custom_call.1} parent=1 // pred_check_branch
      %1345 = sbr.rel (0) target = $region37
    $region36: #{tpu_custom_call.1} parent=1 // pred_region
      %1346 = dma.done [#allocation4], 32
    $region37: #{tpu_custom_call.1} parent=1 // pred_fallthru
      _
    %1347 = vsyncpa [#allocation3], 1
    %1348 = vsyncpa [#allocation6], 1
    %1349 = vsyncpa [#allocation4], 1

</llo_original>
